<compile_context>
chip_gen: v5e
topology: v5e:2x2
jax: 0.10.0
libtpu: 0.0.40
codegen_flags: <defaults>
</compile_context>

<pallas_src>
import functools

import jax
import jax.numpy as jnp
from jax.experimental import pallas as pl
from jax.experimental.pallas import tpu as pltpu

BN_EPS = 1e-5
LANE = 128


def _round_up(n, m):
    return ((n + m - 1) // m) * m


def _pad_to(x, shape):
    return jnp.pad(x, [(0, s - d) for d, s in zip(x.shape, shape)])


def hgcn_encoder_kernel(x_ref, hn_ref, htb_ref,
                        w1_ref, b1_ref, g1_ref, be1_ref,
                        w2_ref, b2_ref, g2_ref, be2_ref,
                        w3_ref, b3_ref, g3_ref, be3_ref,
                        out_ref, *, n_real):
    # Layer-invariant propagation operators (hoisted + pre-transposed in glue):
    #   Hn  = diag(1/D) @ H     (Np, Ep), bf16
    #   HtB = diag(1/B) @ H^T   (Ep, Np), bf16  -> no XLU transpose per layer.
    Hn = hn_ref[...]
    HtB = htb_ref[...]

    # Row mask: zero-padded node rows must not contaminate the global BN stats.
    row_ids = jax.lax.broadcasted_iota(jnp.int32, (Hn.shape[0], 1), 0)
    row_mask = (row_ids < n_real).astype(jnp.float32)
    inv_n = 1.0 / float(n_real)

    def layer(x, w, b, g, beta):
        # HypergraphConv: feature transform, then node -> edge -> node message
        # passing; all three matmuls on the MXU with bf16 operands / f32 acc.
        x1 = jnp.dot(x.astype(jnp.bfloat16), w,
                     preferred_element_type=jnp.float32)               # (Np, Cp)
        m = jnp.dot(HtB, x1.astype(jnp.bfloat16),
                    preferred_element_type=jnp.float32)                # (Ep, Cp)
        o = jnp.dot(Hn, m.astype(jnp.bfloat16),
                    preferred_element_type=jnp.float32) + b            # (Np, Cp)
        # ReLU (f32 VPU); force padded rows to zero so the BN sums stay clean.
        o = jnp.maximum(o, 0.0) * row_mask
        # BatchNorm1d (training-mode stats), single fused reduction pass:
        # sum(o) and sum(o*o) together; var = E[o^2] - mu^2 (f32 accumulation).
        mu = jnp.sum(o, axis=0, keepdims=True) * inv_n
        ex2 = jnp.sum(o * o, axis=0, keepdims=True) * inv_n
        var = ex2 - mu * mu
        # Fold the affine into a per-column scale/shift -> 2 VPU ops/element.
        scale = g * jax.lax.rsqrt(var + BN_EPS)    # (1, Cp), cheap row vector
        shift = beta - mu * scale                  # (1, Cp)
        return o * scale + shift

    x = x_ref[...]
    x = layer(x, w1_ref[...], b1_ref[...], g1_ref[...], be1_ref[...])
    x = layer(x, w2_ref[...], b2_ref[...], g2_ref[...], be2_ref[...])
    x = layer(x, w3_ref[...], b3_ref[...], g3_ref[...], be3_ref[...])
    out_ref[...] = x.astype(out_ref.dtype)


def init_params(key, dim):
    """Deterministic parameter init mirroring HypergraphConv + BatchNorm1d shapes."""
    params = []
    for _ in range(3):
        kw, key = jax.random.split(key)
        scale = (6.0 / (dim + dim)) ** 0.5  # glorot-uniform-ish linear weight
        w = jax.random.uniform(kw, (dim, dim), jnp.float32, -scale, scale)
        b = jnp.zeros((1, dim), jnp.float32)      # HypergraphConv bias
        g = jnp.ones((1, dim), jnp.float32)       # BatchNorm gamma
        beta = jnp.zeros((1, dim), jnp.float32)   # BatchNorm beta
        params += [w, b, g, beta]
    return params


@functools.partial(jax.jit, static_argnames=("num_edges",))
def hgcn_encoder(edge_index, node_attr, edge_attr, params, *, num_edges):
    del edge_attr  # unused by the reference forward pass
    N, dim = node_attr.shape
    Np = _round_up(N, LANE)          # lane-dense contraction dim for HtB @ (.)
    Ep = _round_up(num_edges, LANE)
    Cp = _round_up(dim, LANE)

    # Densify the incidence matrix (glue-side scatter; no clean single-kernel form).
    H = jnp.zeros((N, num_edges), jnp.float32).at[edge_index[0], edge_index[1]].set(1.0)
    d = jnp.sum(H, axis=1, keepdims=True)        # (N, 1) node hyperedge-degree
    bdeg = jnp.sum(H, axis=0, keepdims=True)     # (1, E) hyperedge cardinality
    Dinv = jnp.where(d > 0, 1.0 / d, 0.0)
    Binv = jnp.where(bdeg > 0, 1.0 / bdeg, 0.0)

    # One-time hoists: fold normalizations into H, pre-transpose, pad lane-dense,
    # cast propagation operators + weights to bf16.
    Hn = _pad_to(Dinv * H, (Np, Ep)).astype(jnp.bfloat16)         # (Np, Ep)
    HtB = _pad_to((Binv * H).T, (Ep, Np)).astype(jnp.bfloat16)    # (Ep, Np)
    x = _pad_to(node_attr.astype(jnp.float32), (Np, Cp))          # (Np, Cp)

    padded = []
    for i in range(0, len(params), 4):
        w, b, g, beta = params[i:i + 4]
        padded += [_pad_to(w, (Cp, Cp)).astype(jnp.bfloat16),
                   _pad_to(b, (1, Cp)).astype(jnp.float32),
                   _pad_to(g, (1, Cp)).astype(jnp.float32),
                   _pad_to(beta, (1, Cp)).astype(jnp.float32)]

    vmem = pl.BlockSpec(memory_space=pltpu.MemorySpace.VMEM)
    n_in = 3 + len(padded)

    cost = pl.CostEstimate(
        flops=3 * (2 * Np * Cp * Cp + 4 * Np * Ep * Cp),
        transcendentals=3 * Cp,
        bytes_accessed=(2 * Np * Ep + 2 * Ep * Np + 4 * Np * Cp
                        + 3 * (2 * Cp * Cp + 3 * 4 * Cp) + 4 * Np * Cp),
    )

    # TODO(synk): for large N, add a node-tiled grid ("parallel" node axis for v7x
    # dual-TC, "arbitrary" accumulation axis) with cross-tile BN accumulators and a
    # finalize pass — BatchNorm statistics are global over all N rows, so a naive
    # per-tile mean/var would be wrong.  If Np << Ep, pre-fusing P = Hn @ HtB in
    # glue would also halve the per-layer MXU work.
    out = pl.pallas_call(
        functools.partial(hgcn_encoder_kernel, n_real=N),
        out_shape=jax.ShapeDtypeStruct((Np, Cp), jnp.float32),
        in_specs=[vmem] * n_in,
        out_specs=vmem,
        compiler_params=pltpu.CompilerParams(vmem_limit_bytes=48 * 1024 * 1024),
        cost_estimate=cost,
    )(x, Hn, HtB, *padded)
    return out[:N, :dim]


if __name__ == "__main__":
    key = jax.random.PRNGKey(0)
    N, E, dim = 16, 8, 32

    k_params, k_nodes, k_edges = jax.random.split(key, 3)

    # Each node belongs to two hyperedges -> 2*N incidence entries.
    nodes = jnp.arange(N, dtype=jnp.int32)
    edge_index = jnp.stack([
        jnp.concatenate([nodes, nodes]),
        jnp.concatenate([nodes % E, (nodes + 3) % E]),
    ])                                                   # (2, 2N)

    node_attr = jax.random.normal(k_nodes, (N, dim), jnp.float32)
    edge_attr = jax.random.normal(k_edges, (E, dim), jnp.float32)  # unused, parity only

    params = init_params(k_params, dim)

    out = hgcn_encoder(edge_index, node_attr, edge_attr, params, num_edges=E)
    jax.block_until_ready(out)
    assert out.shape == (N, dim) and out.dtype == jnp.float32
    print("KERNEL_OK")
</pallas_src>

<mosaic_0001>
module attributes {stable_mosaic.version = 11 : i64} {
  func.func @hgcn_encoder_kernel(%arg0: memref<128x128xf32, #tpu.memory_space<vmem>>, %arg1: memref<128x128xbf16, #tpu.memory_space<vmem>>, %arg2: memref<128x128xbf16, #tpu.memory_space<vmem>>, %arg3: memref<128x128xbf16, #tpu.memory_space<vmem>>, %arg4: memref<1x128xf32, #tpu.memory_space<vmem>>, %arg5: memref<1x128xf32, #tpu.memory_space<vmem>>, %arg6: memref<1x128xf32, #tpu.memory_space<vmem>>, %arg7: memref<128x128xbf16, #tpu.memory_space<vmem>>, %arg8: memref<1x128xf32, #tpu.memory_space<vmem>>, %arg9: memref<1x128xf32, #tpu.memory_space<vmem>>, %arg10: memref<1x128xf32, #tpu.memory_space<vmem>>, %arg11: memref<128x128xbf16, #tpu.memory_space<vmem>>, %arg12: memref<1x128xf32, #tpu.memory_space<vmem>>, %arg13: memref<1x128xf32, #tpu.memory_space<vmem>>, %arg14: memref<1x128xf32, #tpu.memory_space<vmem>>, %arg15: memref<128x128xf32, #tpu.memory_space<vmem>>) attributes {dimension_semantics = [], scalar_prefetch = 0 : i64, scratch_operands = 0 : i64, tpu.core_type = #tpu.core_type<tc>} {
    %c0 = arith.constant 0 : index
    %c0_0 = arith.constant 0 : index
    %0 = vector.load %arg1[%c0, %c0_0] : memref<128x128xbf16, #tpu.memory_space<vmem>>, vector<128x128xbf16>
    %c0_1 = arith.constant 0 : index
    %c0_2 = arith.constant 0 : index
    %1 = vector.load %arg2[%c0_1, %c0_2] : memref<128x128xbf16, #tpu.memory_space<vmem>>, vector<128x128xbf16>
    %2 = tpu.iota {dimensions = array<i32: 0>} : vector<128x1xi32>
    %c16_i32 = arith.constant 16 : i32
    %3 = vector.broadcast %c16_i32 : i32 to vector<128x1xi32>
    %4 = arith.cmpi slt, %2, %3 : vector<128x1xi32>
    %5 = arith.extui %4 : vector<128x1xi1> to vector<128x1xi32>
    %6 = arith.sitofp %5 : vector<128x1xi32> to vector<128x1xf32>
    %c0_3 = arith.constant 0 : index
    %c0_4 = arith.constant 0 : index
    %7 = vector.load %arg0[%c0_3, %c0_4] : memref<128x128xf32, #tpu.memory_space<vmem>>, vector<128x128xf32>
    %c0_5 = arith.constant 0 : index
    %c0_6 = arith.constant 0 : index
    %8 = vector.load %arg3[%c0_5, %c0_6] : memref<128x128xbf16, #tpu.memory_space<vmem>>, vector<128x128xbf16>
    %c0_7 = arith.constant 0 : index
    %c0_8 = arith.constant 0 : index
    %9 = vector.load %arg4[%c0_7, %c0_8] : memref<1x128xf32, #tpu.memory_space<vmem>>, vector<1x128xf32>
    %c0_9 = arith.constant 0 : index
    %c0_10 = arith.constant 0 : index
    %10 = vector.load %arg5[%c0_9, %c0_10] : memref<1x128xf32, #tpu.memory_space<vmem>>, vector<1x128xf32>
    %c0_11 = arith.constant 0 : index
    %c0_12 = arith.constant 0 : index
    %11 = vector.load %arg6[%c0_11, %c0_12] : memref<1x128xf32, #tpu.memory_space<vmem>>, vector<1x128xf32>
    %12 = arith.truncf %7 : vector<128x128xf32> to vector<128x128xbf16>
    %cst = arith.constant dense<0.000000e+00> : vector<128x128xf32>
    %13 = tpu.matmul %12, %8, %cst {dimension_numbers = #tpu.dot_dimension_numbers<[1], [0], [0], [1], [0, 0, 1, 1], [], []>} : vector<128x128xbf16>, vector<128x128xbf16>, vector<128x128xf32> -> vector<128x128xf32>
    %14 = arith.truncf %13 : vector<128x128xf32> to vector<128x128xbf16>
    %cst_13 = arith.constant dense<0.000000e+00> : vector<128x128xf32>
    %15 = tpu.matmul %1, %14, %cst_13 {dimension_numbers = #tpu.dot_dimension_numbers<[1], [0], [0], [1], [0, 0, 1, 1], [], []>} : vector<128x128xbf16>, vector<128x128xbf16>, vector<128x128xf32> -> vector<128x128xf32>
    %16 = arith.truncf %15 : vector<128x128xf32> to vector<128x128xbf16>
    %cst_14 = arith.constant dense<0.000000e+00> : vector<128x128xf32>
    %17 = tpu.matmul %0, %16, %cst_14 {dimension_numbers = #tpu.dot_dimension_numbers<[1], [0], [0], [1], [0, 0, 1, 1], [], []>} : vector<128x128xbf16>, vector<128x128xbf16>, vector<128x128xf32> -> vector<128x128xf32>
    %18 = vector.broadcast %9 : vector<1x128xf32> to vector<128x128xf32>
    %19 = arith.addf %17, %18 : vector<128x128xf32>
    %cst_15 = arith.constant 0.000000e+00 : f32
    %20 = vector.broadcast %cst_15 : f32 to vector<128x128xf32>
    %21 = arith.maximumf %19, %20 : vector<128x128xf32>
    %22 = vector.broadcast %6 : vector<128x1xf32> to vector<128x128xf32>
    %23 = arith.mulf %21, %22 : vector<128x128xf32>
    %cst_16 = arith.constant dense<0.000000e+00> : vector<128xf32>
    %24 = vector.multi_reduction <add>, %23, %cst_16 [0] : vector<128x128xf32> to vector<128xf32>
    %25 = vector.shape_cast %24 : vector<128xf32> to vector<1x128xf32>
    %cst_17 = arith.constant 6.250000e-02 : f32
    %26 = vector.broadcast %cst_17 : f32 to vector<1x128xf32>
    %27 = arith.mulf %25, %26 : vector<1x128xf32>
    %28 = arith.mulf %23, %23 : vector<128x128xf32>
    %cst_18 = arith.constant dense<0.000000e+00> : vector<128xf32>
    %29 = vector.multi_reduction <add>, %28, %cst_18 [0] : vector<128x128xf32> to vector<128xf32>
    %30 = vector.shape_cast %29 : vector<128xf32> to vector<1x128xf32>
    %cst_19 = arith.constant 6.250000e-02 : f32
    %31 = vector.broadcast %cst_19 : f32 to vector<1x128xf32>
    %32 = arith.mulf %30, %31 : vector<1x128xf32>
    %33 = arith.mulf %27, %27 : vector<1x128xf32>
    %34 = arith.subf %32, %33 : vector<1x128xf32>
    %cst_20 = arith.constant 9.99999974E-6 : f32
    %35 = vector.broadcast %cst_20 : f32 to vector<1x128xf32>
    %36 = arith.addf %34, %35 : vector<1x128xf32>
    %37 = math.rsqrt %36 : vector<1x128xf32>
    %38 = arith.mulf %10, %37 : vector<1x128xf32>
    %39 = arith.mulf %27, %38 : vector<1x128xf32>
    %40 = arith.subf %11, %39 : vector<1x128xf32>
    %41 = vector.broadcast %38 : vector<1x128xf32> to vector<128x128xf32>
    %42 = arith.mulf %23, %41 : vector<128x128xf32>
    %43 = vector.broadcast %40 : vector<1x128xf32> to vector<128x128xf32>
    %44 = arith.addf %42, %43 : vector<128x128xf32>
    %c0_21 = arith.constant 0 : index
    %c0_22 = arith.constant 0 : index
    %45 = vector.load %arg7[%c0_21, %c0_22] : memref<128x128xbf16, #tpu.memory_space<vmem>>, vector<128x128xbf16>
    %c0_23 = arith.constant 0 : index
    %c0_24 = arith.constant 0 : index
    %46 = vector.load %arg8[%c0_23, %c0_24] : memref<1x128xf32, #tpu.memory_space<vmem>>, vector<1x128xf32>
    %c0_25 = arith.constant 0 : index
    %c0_26 = arith.constant 0 : index
    %47 = vector.load %arg9[%c0_25, %c0_26] : memref<1x128xf32, #tpu.memory_space<vmem>>, vector<1x128xf32>
    %c0_27 = arith.constant 0 : index
    %c0_28 = arith.constant 0 : index
    %48 = vector.load %arg10[%c0_27, %c0_28] : memref<1x128xf32, #tpu.memory_space<vmem>>, vector<1x128xf32>
    %49 = arith.truncf %44 : vector<128x128xf32> to vector<128x128xbf16>
    %cst_29 = arith.constant dense<0.000000e+00> : vector<128x128xf32>
    %50 = tpu.matmul %49, %45, %cst_29 {dimension_numbers = #tpu.dot_dimension_numbers<[1], [0], [0], [1], [0, 0, 1, 1], [], []>} : vector<128x128xbf16>, vector<128x128xbf16>, vector<128x128xf32> -> vector<128x128xf32>
    %51 = arith.truncf %50 : vector<128x128xf32> to vector<128x128xbf16>
    %cst_30 = arith.constant dense<0.000000e+00> : vector<128x128xf32>
    %52 = tpu.matmul %1, %51, %cst_30 {dimension_numbers = #tpu.dot_dimension_numbers<[1], [0], [0], [1], [0, 0, 1, 1], [], []>} : vector<128x128xbf16>, vector<128x128xbf16>, vector<128x128xf32> -> vector<128x128xf32>
    %53 = arith.truncf %52 : vector<128x128xf32> to vector<128x128xbf16>
    %cst_31 = arith.constant dense<0.000000e+00> : vector<128x128xf32>
    %54 = tpu.matmul %0, %53, %cst_31 {dimension_numbers = #tpu.dot_dimension_numbers<[1], [0], [0], [1], [0, 0, 1, 1], [], []>} : vector<128x128xbf16>, vector<128x128xbf16>, vector<128x128xf32> -> vector<128x128xf32>
    %55 = vector.broadcast %46 : vector<1x128xf32> to vector<128x128xf32>
    %56 = arith.addf %54, %55 : vector<128x128xf32>
    %cst_32 = arith.constant 0.000000e+00 : f32
    %57 = vector.broadcast %cst_32 : f32 to vector<128x128xf32>
    %58 = arith.maximumf %56, %57 : vector<128x128xf32>
    %59 = vector.broadcast %6 : vector<128x1xf32> to vector<128x128xf32>
    %60 = arith.mulf %58, %59 : vector<128x128xf32>
    %cst_33 = arith.constant dense<0.000000e+00> : vector<128xf32>
    %61 = vector.multi_reduction <add>, %60, %cst_33 [0] : vector<128x128xf32> to vector<128xf32>
    %62 = vector.shape_cast %61 : vector<128xf32> to vector<1x128xf32>
    %cst_34 = arith.constant 6.250000e-02 : f32
    %63 = vector.broadcast %cst_34 : f32 to vector<1x128xf32>
    %64 = arith.mulf %62, %63 : vector<1x128xf32>
    %65 = arith.mulf %60, %60 : vector<128x128xf32>
    %cst_35 = arith.constant dense<0.000000e+00> : vector<128xf32>
    %66 = vector.multi_reduction <add>, %65, %cst_35 [0] : vector<128x128xf32> to vector<128xf32>
    %67 = vector.shape_cast %66 : vector<128xf32> to vector<1x128xf32>
    %cst_36 = arith.constant 6.250000e-02 : f32
    %68 = vector.broadcast %cst_36 : f32 to vector<1x128xf32>
    %69 = arith.mulf %67, %68 : vector<1x128xf32>
    %70 = arith.mulf %64, %64 : vector<1x128xf32>
    %71 = arith.subf %69, %70 : vector<1x128xf32>
    %cst_37 = arith.constant 9.99999974E-6 : f32
    %72 = vector.broadcast %cst_37 : f32 to vector<1x128xf32>
    %73 = arith.addf %71, %72 : vector<1x128xf32>
    %74 = math.rsqrt %73 : vector<1x128xf32>
    %75 = arith.mulf %47, %74 : vector<1x128xf32>
    %76 = arith.mulf %64, %75 : vector<1x128xf32>
    %77 = arith.subf %48, %76 : vector<1x128xf32>
    %78 = vector.broadcast %75 : vector<1x128xf32> to vector<128x128xf32>
    %79 = arith.mulf %60, %78 : vector<128x128xf32>
    %80 = vector.broadcast %77 : vector<1x128xf32> to vector<128x128xf32>
    %81 = arith.addf %79, %80 : vector<128x128xf32>
    %c0_38 = arith.constant 0 : index
    %c0_39 = arith.constant 0 : index
    %82 = vector.load %arg11[%c0_38, %c0_39] : memref<128x128xbf16, #tpu.memory_space<vmem>>, vector<128x128xbf16>
    %c0_40 = arith.constant 0 : index
    %c0_41 = arith.constant 0 : index
    %83 = vector.load %arg12[%c0_40, %c0_41] : memref<1x128xf32, #tpu.memory_space<vmem>>, vector<1x128xf32>
    %c0_42 = arith.constant 0 : index
    %c0_43 = arith.constant 0 : index
    %84 = vector.load %arg13[%c0_42, %c0_43] : memref<1x128xf32, #tpu.memory_space<vmem>>, vector<1x128xf32>
    %c0_44 = arith.constant 0 : index
    %c0_45 = arith.constant 0 : index
    %85 = vector.load %arg14[%c0_44, %c0_45] : memref<1x128xf32, #tpu.memory_space<vmem>>, vector<1x128xf32>
    %86 = arith.truncf %81 : vector<128x128xf32> to vector<128x128xbf16>
    %cst_46 = arith.constant dense<0.000000e+00> : vector<128x128xf32>
    %87 = tpu.matmul %86, %82, %cst_46 {dimension_numbers = #tpu.dot_dimension_numbers<[1], [0], [0], [1], [0, 0, 1, 1], [], []>} : vector<128x128xbf16>, vector<128x128xbf16>, vector<128x128xf32> -> vector<128x128xf32>
    %88 = arith.truncf %87 : vector<128x128xf32> to vector<128x128xbf16>
    %cst_47 = arith.constant dense<0.000000e+00> : vector<128x128xf32>
    %89 = tpu.matmul %1, %88, %cst_47 {dimension_numbers = #tpu.dot_dimension_numbers<[1], [0], [0], [1], [0, 0, 1, 1], [], []>} : vector<128x128xbf16>, vector<128x128xbf16>, vector<128x128xf32> -> vector<128x128xf32>
    %90 = arith.truncf %89 : vector<128x128xf32> to vector<128x128xbf16>
    %cst_48 = arith.constant dense<0.000000e+00> : vector<128x128xf32>
    %91 = tpu.matmul %0, %90, %cst_48 {dimension_numbers = #tpu.dot_dimension_numbers<[1], [0], [0], [1], [0, 0, 1, 1], [], []>} : vector<128x128xbf16>, vector<128x128xbf16>, vector<128x128xf32> -> vector<128x128xf32>
    %92 = vector.broadcast %83 : vector<1x128xf32> to vector<128x128xf32>
    %93 = arith.addf %91, %92 : vector<128x128xf32>
    %cst_49 = arith.constant 0.000000e+00 : f32
    %94 = vector.broadcast %cst_49 : f32 to vector<128x128xf32>
    %95 = arith.maximumf %93, %94 : vector<128x128xf32>
    %96 = vector.broadcast %6 : vector<128x1xf32> to vector<128x128xf32>
    %97 = arith.mulf %95, %96 : vector<128x128xf32>
    %cst_50 = arith.constant dense<0.000000e+00> : vector<128xf32>
    %98 = vector.multi_reduction <add>, %97, %cst_50 [0] : vector<128x128xf32> to vector<128xf32>
    %99 = vector.shape_cast %98 : vector<128xf32> to vector<1x128xf32>
    %cst_51 = arith.constant 6.250000e-02 : f32
    %100 = vector.broadcast %cst_51 : f32 to vector<1x128xf32>
    %101 = arith.mulf %99, %100 : vector<1x128xf32>
    %102 = arith.mulf %97, %97 : vector<128x128xf32>
    %cst_52 = arith.constant dense<0.000000e+00> : vector<128xf32>
    %103 = vector.multi_reduction <add>, %102, %cst_52 [0] : vector<128x128xf32> to vector<128xf32>
    %104 = vector.shape_cast %103 : vector<128xf32> to vector<1x128xf32>
    %cst_53 = arith.constant 6.250000e-02 : f32
    %105 = vector.broadcast %cst_53 : f32 to vector<1x128xf32>
    %106 = arith.mulf %104, %105 : vector<1x128xf32>
    %107 = arith.mulf %101, %101 : vector<1x128xf32>
    %108 = arith.subf %106, %107 : vector<1x128xf32>
    %cst_54 = arith.constant 9.99999974E-6 : f32
    %109 = vector.broadcast %cst_54 : f32 to vector<1x128xf32>
    %110 = arith.addf %108, %109 : vector<1x128xf32>
    %111 = math.rsqrt %110 : vector<1x128xf32>
    %112 = arith.mulf %84, %111 : vector<1x128xf32>
    %113 = arith.mulf %101, %112 : vector<1x128xf32>
    %114 = arith.subf %85, %113 : vector<1x128xf32>
    %115 = vector.broadcast %112 : vector<1x128xf32> to vector<128x128xf32>
    %116 = arith.mulf %97, %115 : vector<128x128xf32>
    %117 = vector.broadcast %114 : vector<1x128xf32> to vector<128x128xf32>
    %118 = arith.addf %116, %117 : vector<128x128xf32>
    %c0_55 = arith.constant 0 : index
    %c0_56 = arith.constant 0 : index
    %119 = vector.load %arg15[%c0_55, %c0_56] : memref<128x128xf32, #tpu.memory_space<vmem>>, vector<128x128xf32>
    tpu.vector_store %arg15[%c0_55, %c0_56], %118 {strides = array<i32>} : memref<128x128xf32, #tpu.memory_space<vmem>>, vector<128x128xf32>,
    return
  }
}

</mosaic_0001>

<llo_original>
// kernel: hgcn_encoder.1
$region0: #{hgcn_encoder.1}
  #allocation0 [shape = 'u32[]', space=smem, size = 0x4, offset = 0x4, fixed_abs, tag = 'smem constant byte address 0x4 - core index']
  #allocation1 [shape = 'u32[72,128]{1,0:T(1,128)}', space=vmem, size = 0x9000, scoped, tag = 'internal scratch']
  %s0 = inlined_call_operand.vmem [shape: f32[128,128], index: 0, kind: input, shape index: {}]
  %s1 = inlined_call_operand.vmem [shape: bf16[128,128], index: 1, kind: input, shape index: {}]
  %s2 = inlined_call_operand.vmem [shape: bf16[128,128], index: 2, kind: input, shape index: {}]
  %s3 = inlined_call_operand.vmem [shape: bf16[128,128], index: 3, kind: input, shape index: {}]
  %s4 = inlined_call_operand.vmem [shape: f32[1,128], index: 4, kind: input, shape index: {}]
  %s5 = inlined_call_operand.vmem [shape: f32[1,128], index: 5, kind: input, shape index: {}]
  %s6 = inlined_call_operand.vmem [shape: f32[1,128], index: 6, kind: input, shape index: {}]
  %s7 = inlined_call_operand.vmem [shape: bf16[128,128], index: 7, kind: input, shape index: {}]
  %s8 = inlined_call_operand.vmem [shape: f32[1,128], index: 8, kind: input, shape index: {}]
  %s9 = inlined_call_operand.vmem [shape: f32[1,128], index: 9, kind: input, shape index: {}]
  %s10 = inlined_call_operand.vmem [shape: f32[1,128], index: 10, kind: input, shape index: {}]
  %s11 = inlined_call_operand.vmem [shape: bf16[128,128], index: 11, kind: input, shape index: {}]
  %s12 = inlined_call_operand.vmem [shape: f32[1,128], index: 12, kind: input, shape index: {}]
  %s13 = inlined_call_operand.vmem [shape: f32[1,128], index: 13, kind: input, shape index: {}]
  %s14 = inlined_call_operand.vmem [shape: f32[1,128], index: 14, kind: input, shape index: {}]
  %s15 = inlined_call_operand.vmem [shape: f32[128,128], index: 15, kind: output, shape index: {}]
  %s16 = sld [smem:[#allocation0]]
  $region70: #{hgcn_encoder.1} parent=0
    _
  %s18 = ssub.s32 1, %s16
  %s19 = scalar_select 0, %s18, %s16
  // Predicated region
  $region2: #{hgcn_encoder.1} parent=0 // pred_check
    _
  $region3: #{hgcn_encoder.1} parent=0 // pred_check_branch
    %21 = sbr.rel (0) target = $region5
  $region4: #{hgcn_encoder.1} parent=0 // pred_region
    _
  $region5: #{hgcn_encoder.1} parent=0 // pred_fallthru
    _
  // Predicated region
  $region6: #{hgcn_encoder.1} parent=0 // pred_check
    _
  $region7: #{hgcn_encoder.1} parent=0 // pred_check_branch
    %23 = sbr.rel (0) target = $region9
  $region8: #{hgcn_encoder.1} parent=0 // pred_region
    _
  $region9: #{hgcn_encoder.1} parent=0 // pred_fallthru
    _
  // Predicated region
  $region10: #{hgcn_encoder.1} parent=0 // pred_check
    _
  $region11: #{hgcn_encoder.1} parent=0 // pred_check_branch
    %25 = sbr.rel (0) target = $region13
  $region12: #{hgcn_encoder.1} parent=0 // pred_region
    _
  $region13: #{hgcn_encoder.1} parent=0 // pred_fallthru
    _
  // Predicated region
  $region14: #{hgcn_encoder.1} parent=0 // pred_check
    _
  $region15: #{hgcn_encoder.1} parent=0 // pred_check_branch
    %27 = sbr.rel (0) target = $region17
  $region16: #{hgcn_encoder.1} parent=0 // pred_region
    _
  $region17: #{hgcn_encoder.1} parent=0 // pred_fallthru
    _
  // Predicated region
  $region18: #{hgcn_encoder.1} parent=0 // pred_check
    _
  $region19: #{hgcn_encoder.1} parent=0 // pred_check_branch
    %29 = sbr.rel (0) target = $region21
  $region20: #{hgcn_encoder.1} parent=0 // pred_region
    _
  $region21: #{hgcn_encoder.1} parent=0 // pred_fallthru
    _
  // Predicated region
  $region22: #{hgcn_encoder.1} parent=0 // pred_check
    _
  $region23: #{hgcn_encoder.1} parent=0 // pred_check_branch
    %31 = sbr.rel (0) target = $region25
  $region24: #{hgcn_encoder.1} parent=0 // pred_region
    _
  $region25: #{hgcn_encoder.1} parent=0 // pred_fallthru
    _
  // Predicated region
  $region26: #{hgcn_encoder.1} parent=0 // pred_check
    _
  $region27: #{hgcn_encoder.1} parent=0 // pred_check_branch
    %33 = sbr.rel (0) target = $region29
  $region28: #{hgcn_encoder.1} parent=0 // pred_region
    _
  $region29: #{hgcn_encoder.1} parent=0 // pred_fallthru
    _
  // Predicated region
  $region30: #{hgcn_encoder.1} parent=0 // pred_check
    _
  $region31: #{hgcn_encoder.1} parent=0 // pred_check_branch
    %35 = sbr.rel (0) target = $region33
  $region32: #{hgcn_encoder.1} parent=0 // pred_region
    _
  $region33: #{hgcn_encoder.1} parent=0 // pred_fallthru
    _
  // Predicated region
  $region34: #{hgcn_encoder.1} parent=0 // pred_check
    _
  $region35: #{hgcn_encoder.1} parent=0 // pred_check_branch
    %37 = sbr.rel (0) target = $region37
  $region36: #{hgcn_encoder.1} parent=0 // pred_region
    _
  $region37: #{hgcn_encoder.1} parent=0 // pred_fallthru
    _
  // Predicated region
  $region38: #{hgcn_encoder.1} parent=0 // pred_check
    _
  $region39: #{hgcn_encoder.1} parent=0 // pred_check_branch
    %39 = sbr.rel (0) target = $region41
  $region40: #{hgcn_encoder.1} parent=0 // pred_region
    _
  $region41: #{hgcn_encoder.1} parent=0 // pred_fallthru
    _
  // Predicated region
  $region42: #{hgcn_encoder.1} parent=0 // pred_check
    _
  $region43: #{hgcn_encoder.1} parent=0 // pred_check_branch
    %41 = sbr.rel (0) target = $region45
  $region44: #{hgcn_encoder.1} parent=0 // pred_region
    _
  $region45: #{hgcn_encoder.1} parent=0 // pred_fallthru
    _
  // Predicated region
  $region46: #{hgcn_encoder.1} parent=0 // pred_check
    _
  $region47: #{hgcn_encoder.1} parent=0 // pred_check_branch
    %43 = sbr.rel (0) target = $region49
  $region48: #{hgcn_encoder.1} parent=0 // pred_region
    _
  $region49: #{hgcn_encoder.1} parent=0 // pred_fallthru
    _
  // Predicated region
  $region50: #{hgcn_encoder.1} parent=0 // pred_check
    _
  $region51: #{hgcn_encoder.1} parent=0 // pred_check_branch
    %45 = sbr.rel (0) target = $region53
  $region52: #{hgcn_encoder.1} parent=0 // pred_region
    _
  $region53: #{hgcn_encoder.1} parent=0 // pred_fallthru
    _
  // Predicated region
  $region54: #{hgcn_encoder.1} parent=0 // pred_check
    _
  $region55: #{hgcn_encoder.1} parent=0 // pred_check_branch
    %47 = sbr.rel (0) target = $region57
  $region56: #{hgcn_encoder.1} parent=0 // pred_region
    _
  $region57: #{hgcn_encoder.1} parent=0 // pred_fallthru
    _
  // Predicated region
  $region58: #{hgcn_encoder.1} parent=0 // pred_check
    _
  $region59: #{hgcn_encoder.1} parent=0 // pred_check_branch
    %49 = sbr.rel (0) target = $region61
  $region60: #{hgcn_encoder.1} parent=0 // pred_region
    _
  $region61: #{hgcn_encoder.1} parent=0 // pred_fallthru
    _
  %v50 = vld [vmem:[%s1] sm:$0xf]
  %v51 = vld [vmem:[%s1 + $0x4] sm:$0xf]
  %v52 = vld [vmem:[%s1 + $0x8] sm:$0xf]
  %v53 = vld [vmem:[%s1 + $0xc] sm:$0xf]
  %v54 = vld [vmem:[%s1 + $0x10] sm:$0xf]
  %v55 = vld [vmem:[%s1 + $0x14] sm:$0xf]
  %v56 = vld [vmem:[%s1 + $0x18] sm:$0xf]
  %v57 = vld [vmem:[%s1 + $0x1c] sm:$0xf]
  %v58 = vld [vmem:[%s1 + $0x20] sm:$0xf]
  %v59 = vld [vmem:[%s1 + $0x24] sm:$0xf]
  %v60 = vld [vmem:[%s1 + $0x28] sm:$0xf]
  %v61 = vld [vmem:[%s1 + $0x2c] sm:$0xf]
  %v62 = vld [vmem:[%s1 + $0x30] sm:$0xf]
  %v63 = vld [vmem:[%s1 + $0x34] sm:$0xf]
  %v64 = vld [vmem:[%s1 + $0x38] sm:$0xf]
  %v65 = vld [vmem:[%s1 + $0x3c] sm:$0xf]
  %v66 = vld [vmem:[%s2] sm:$0xf]
  %v67 = vld [vmem:[%s2 + $0x4] sm:$0xf]
  %v68 = vld [vmem:[%s2 + $0x8] sm:$0xf]
  %v69 = vld [vmem:[%s2 + $0xc] sm:$0xf]
  %v70 = vld [vmem:[%s2 + $0x10] sm:$0xf]
  %v71 = vld [vmem:[%s2 + $0x14] sm:$0xf]
  %v72 = vld [vmem:[%s2 + $0x18] sm:$0xf]
  %v73 = vld [vmem:[%s2 + $0x1c] sm:$0xf]
  %v74 = vld [vmem:[%s2 + $0x20] sm:$0xf]
  %v75 = vld [vmem:[%s2 + $0x24] sm:$0xf]
  %v76 = vld [vmem:[%s2 + $0x28] sm:$0xf]
  %v77 = vld [vmem:[%s2 + $0x2c] sm:$0xf]
  %v78 = vld [vmem:[%s2 + $0x30] sm:$0xf]
  %v79 = vld [vmem:[%s2 + $0x34] sm:$0xf]
  %v80 = vld [vmem:[%s2 + $0x38] sm:$0xf]
  %v81 = vld [vmem:[%s2 + $0x3c] sm:$0xf]
  %v82 = vlaneseq
  %v83 = vshrl.u32 %v82, 7
  %v84 = vadd.s32 %v83, 8
  %v85 = vadd.s32 %v83, 16
  %v86 = vadd.s32 %v83, 24
  %v87 = vadd.s32 %v83, 32
  %v88 = vadd.s32 %v83, 40
  %v89 = vadd.s32 %v83, 48
  %v90 = vadd.s32 %v83, 56
  %v91 = vadd.s32 %v83, 64
  %v92 = vadd.s32 %v83, 72
  %v93 = vadd.s32 %v83, 80
  %v94 = vadd.s32 %v83, 88
  %v95 = vadd.s32 %v83, 96
  %v96 = vadd.s32 %v83, 104
  %v97 = vadd.s32 %v83, 112
  %v98 = vadd.s32 %v83, 120
  %vm99 = vcmp.lt.s32.totalorder %v83, 16
  %vm100 = vcmp.lt.s32.totalorder %v84, 16
  %vm101 = vcmp.lt.s32.totalorder %v85, 16
  %vm102 = vcmp.lt.s32.totalorder %v86, 16
  %vm103 = vcmp.lt.s32.totalorder %v87, 16
  %vm104 = vcmp.lt.s32.totalorder %v88, 16
  %vm105 = vcmp.lt.s32.totalorder %v89, 16
  %vm106 = vcmp.lt.s32.totalorder %v90, 16
  %vm107 = vcmp.lt.s32.totalorder %v91, 16
  %vm108 = vcmp.lt.s32.totalorder %v92, 16
  %vm109 = vcmp.lt.s32.totalorder %v93, 16
  %vm110 = vcmp.lt.s32.totalorder %v94, 16
  %vm111 = vcmp.lt.s32.totalorder %v95, 16
  %vm112 = vcmp.lt.s32.totalorder %v96, 16
  %vm113 = vcmp.lt.s32.totalorder %v97, 16
  %vm114 = vcmp.lt.s32.totalorder %v98, 16
  %v115 = vsel %vm99, 1, 0
  %v116 = vsel %vm100, 1, 0
  %v117 = vsel %vm101, 1, 0
  %v118 = vsel %vm102, 1, 0
  %v119 = vsel %vm103, 1, 0
  %v120 = vsel %vm104, 1, 0
  %v121 = vsel %vm105, 1, 0
  %v122 = vsel %vm106, 1, 0
  %v123 = vsel %vm107, 1, 0
  %v124 = vsel %vm108, 1, 0
  %v125 = vsel %vm109, 1, 0
  %v126 = vsel %vm110, 1, 0
  %v127 = vsel %vm111, 1, 0
  %v128 = vsel %vm112, 1, 0
  %v129 = vsel %vm113, 1, 0
  %v130 = vsel %vm114, 1, 0
  %v131 = vcvt.s32.f32 %v115
  %v132 = vcvt.s32.f32 %v116
  %v133 = vcvt.s32.f32 %v117
  %v134 = vcvt.s32.f32 %v118
  %v135 = vcvt.s32.f32 %v119
  %v136 = vcvt.s32.f32 %v120
  %v137 = vcvt.s32.f32 %v121
  %v138 = vcvt.s32.f32 %v122
  %v139 = vcvt.s32.f32 %v123
  %v140 = vcvt.s32.f32 %v124
  %v141 = vcvt.s32.f32 %v125
  %v142 = vcvt.s32.f32 %v126
  %v143 = vcvt.s32.f32 %v127
  %v144 = vcvt.s32.f32 %v128
  %v145 = vcvt.s32.f32 %v129
  %v146 = vcvt.s32.f32 %v130
  %v147 = vld [vmem:[%s0] sm:$0xff]
  %v148 = vld [vmem:[%s0 + $0x8] sm:$0xff]
  %v149 = vld [vmem:[%s0 + $0x10] sm:$0xff]
  %v150 = vld [vmem:[%s0 + $0x18] sm:$0xff]
  %v151 = vld [vmem:[%s0 + $0x20] sm:$0xff]
  %v152 = vld [vmem:[%s0 + $0x28] sm:$0xff]
  %v153 = vld [vmem:[%s0 + $0x30] sm:$0xff]
  %v154 = vld [vmem:[%s0 + $0x38] sm:$0xff]
  %v155 = vld [vmem:[%s0 + $0x40] sm:$0xff]
  %v156 = vld [vmem:[%s0 + $0x48] sm:$0xff]
  %v157 = vld [vmem:[%s0 + $0x50] sm:$0xff]
  %v158 = vld [vmem:[%s0 + $0x58] sm:$0xff]
  %v159 = vld [vmem:[%s0 + $0x60] sm:$0xff]
  %v160 = vld [vmem:[%s0 + $0x68] sm:$0xff]
  %v161 = vld [vmem:[%s0 + $0x70] sm:$0xff]
  %v162 = vld [vmem:[%s0 + $0x78] sm:$0xff]
  %v163 = vld [vmem:[%s3] sm:$0xf]
  %v164 = vld [vmem:[%s3 + $0x4] sm:$0xf]
  %v165 = vld [vmem:[%s3 + $0x8] sm:$0xf]
  %v166 = vld [vmem:[%s3 + $0xc] sm:$0xf]
  %v167 = vld [vmem:[%s3 + $0x10] sm:$0xf]
  %v168 = vld [vmem:[%s3 + $0x14] sm:$0xf]
  %v169 = vld [vmem:[%s3 + $0x18] sm:$0xf]
  %v170 = vld [vmem:[%s3 + $0x1c] sm:$0xf]
  %v171 = vld [vmem:[%s3 + $0x20] sm:$0xf]
  %v172 = vld [vmem:[%s3 + $0x24] sm:$0xf]
  %v173 = vld [vmem:[%s3 + $0x28] sm:$0xf]
  %v174 = vld [vmem:[%s3 + $0x2c] sm:$0xf]
  %v175 = vld [vmem:[%s3 + $0x30] sm:$0xf]
  %v176 = vld [vmem:[%s3 + $0x34] sm:$0xf]
  %v177 = vld [vmem:[%s3 + $0x38] sm:$0xf]
  %v178 = vld [vmem:[%s3 + $0x3c] sm:$0xf]
  %v179 = vld [vmem:[%s4] sm:$0x1]
  %v180 = vld [vmem:[%s5] sm:$0x1]
  %v181 = vld [vmem:[%s6] sm:$0x1]
  %v182 = vpack.c.bf16 %v148, %v147
  %v183 = vpack.c.bf16 %v150, %v149
  %v184 = vpack.c.bf16 %v152, %v151
  %v185 = vpack.c.bf16 %v154, %v153
  %v186 = vpack.c.bf16 %v156, %v155
  %v187 = vpack.c.bf16 %v158, %v157
  %v188 = vpack.c.bf16 %v160, %v159
  %v189 = vpack.c.bf16 %v162, %v161
  %v206 = vunpack.c.l.b16 %v163
  %v207 = vunpack.c.l.b16 %v164
  %v208 = vunpack.c.l.b16 %v165
  %v209 = vunpack.c.l.b16 %v166
  %v210 = vunpack.c.l.b16 %v167
  %v211 = vunpack.c.l.b16 %v168
  %v212 = vunpack.c.l.b16 %v169
  %v213 = vunpack.c.l.b16 %v170
  %v214 = vunpack.c.l.b16 %v171
  %v215 = vunpack.c.l.b16 %v172
  %v216 = vunpack.c.l.b16 %v173
  %v217 = vunpack.c.l.b16 %v174
  %v218 = vunpack.c.l.b16 %v175
  %v219 = vunpack.c.l.b16 %v176
  %v220 = vunpack.c.l.b16 %v177
  %v221 = vunpack.c.l.b16 %v178
  %v222 = vpack.c.b16 %v207, %v206
  %v223 = vpack.c.b16 %v209, %v208
  %v224 = vpack.c.b16 %v211, %v210
  %v225 = vpack.c.b16 %v213, %v212
  %v226 = vpack.c.b16 %v215, %v214
  %v227 = vpack.c.b16 %v217, %v216
  %v228 = vpack.c.b16 %v219, %v218
  %v229 = vpack.c.b16 %v221, %v220
  %238 = vmatpush.bf16.msra.mxu0 %v229
  %239 = vmatpush.bf16.msra.mxu0 %v228
  %240 = vmatpush.bf16.msra.mxu0 %v227
  %241 = vmatpush.bf16.msra.mxu0 %v226
  %242 = vmatpush.bf16.msra.mxu0 %v225
  %243 = vmatpush.bf16.msra.mxu0 %v224
  %244 = vmatpush.bf16.msra.mxu0 %v223
  %245 = vmatpush.bf16.msra.mxu0 %v222
  %246 = vmatmul.bf16.gmra.mxu0 %v182
  %v247 = vpop.f32.mrf.mxu0
  %v248 = vadd.f32 0.0, %v247
  %v249 = vpop.f32.mrf.mxu0
  %v250 = vadd.f32 0.0, %v249
  %251 = vmatmul.bf16.gmra.mxu0 %v183
  %v252 = vpop.f32.mrf.mxu0
  %v253 = vadd.f32 0.0, %v252
  %v254 = vpop.f32.mrf.mxu0
  %v255 = vadd.f32 0.0, %v254
  %256 = vmatmul.bf16.gmra.mxu0 %v184
  %v257 = vpop.f32.mrf.mxu0
  %v258 = vadd.f32 0.0, %v257
  %v259 = vpop.f32.mrf.mxu0
  %v260 = vadd.f32 0.0, %v259
  %261 = vmatmul.bf16.gmra.mxu0 %v185
  %v262 = vpop.f32.mrf.mxu0
  %v263 = vadd.f32 0.0, %v262
  %v264 = vpop.f32.mrf.mxu0
  %v265 = vadd.f32 0.0, %v264
  %266 = vmatmul.bf16.gmra.mxu0 %v186
  %v267 = vpop.f32.mrf.mxu0
  %v268 = vadd.f32 0.0, %v267
  %v269 = vpop.f32.mrf.mxu0
  %v270 = vadd.f32 0.0, %v269
  %271 = vmatmul.bf16.gmra.mxu0 %v187
  %v272 = vpop.f32.mrf.mxu0
  %v273 = vadd.f32 0.0, %v272
  %v274 = vpop.f32.mrf.mxu0
  %v275 = vadd.f32 0.0, %v274
  %276 = vmatmul.bf16.gmra.mxu0 %v188
  %v277 = vpop.f32.mrf.mxu0
  %v278 = vadd.f32 0.0, %v277
  %v279 = vpop.f32.mrf.mxu0
  %v280 = vadd.f32 0.0, %v279
  %281 = vmatmul.bf16.gmra.mxu0 %v189
  %v282 = vpop.f32.mrf.mxu0
  %v283 = vadd.f32 0.0, %v282
  %v284 = vpop.f32.mrf.mxu0
  %v285 = vadd.f32 0.0, %v284
  %286 = vdwg.mxu0
  %v287 = vpack.c.bf16 %v250, %v248
  %v288 = vpack.c.bf16 %v255, %v253
  %v289 = vpack.c.bf16 %v260, %v258
  %v290 = vpack.c.bf16 %v265, %v263
  %v291 = vpack.c.bf16 %v270, %v268
  %v292 = vpack.c.bf16 %v275, %v273
  %v293 = vpack.c.bf16 %v280, %v278
  %v294 = vpack.c.bf16 %v285, %v283
  %v311 = vunpack.c.l.b16 %v66
  %v312 = vunpack.c.l.b16 %v67
  %v313 = vunpack.c.l.b16 %v68
  %v314 = vunpack.c.l.b16 %v69
  %v315 = vunpack.c.l.b16 %v70
  %v316 = vunpack.c.l.b16 %v71
  %v317 = vunpack.c.l.b16 %v72
  %v318 = vunpack.c.l.b16 %v73
  %v319 = vunpack.c.l.b16 %v74
  %v320 = vunpack.c.l.b16 %v75
  %v321 = vunpack.c.l.b16 %v76
  %v322 = vunpack.c.l.b16 %v77
  %v323 = vunpack.c.l.b16 %v78
  %v324 = vunpack.c.l.b16 %v79
  %v325 = vunpack.c.l.b16 %v80
  %v326 = vunpack.c.l.b16 %v81
  %v327 = vpack.c.b16 %v312, %v311
  %v328 = vpack.c.b16 %v314, %v313
  %v329 = vpack.c.b16 %v316, %v315
  %v330 = vpack.c.b16 %v318, %v317
  %v331 = vpack.c.b16 %v320, %v319
  %v332 = vpack.c.b16 %v322, %v321
  %v333 = vpack.c.b16 %v324, %v323
  %v334 = vpack.c.b16 %v326, %v325
  %343 = vmatpush.bf16.msra.mxu0 %v294
  %344 = vmatpush.bf16.msra.mxu0 %v293
  %345 = vmatpush.bf16.msra.mxu0 %v292
  %346 = vmatpush.bf16.msra.mxu0 %v291
  %347 = vmatpush.bf16.msra.mxu0 %v290
  %348 = vmatpush.bf16.msra.mxu0 %v289
  %349 = vmatpush.bf16.msra.mxu0 %v288
  %350 = vmatpush.bf16.msra.mxu0 %v287
  %351 = vmatmul.bf16.gmra.mxu0 %v327
  %v352 = vpop.f32.mrf.mxu0
  %v353 = vadd.f32 0.0, %v352
  %v354 = vpop.f32.mrf.mxu0
  %v355 = vadd.f32 0.0, %v354
  %356 = vmatmul.bf16.gmra.mxu0 %v328
  %v357 = vpop.f32.mrf.mxu0
  %v358 = vadd.f32 0.0, %v357
  %v359 = vpop.f32.mrf.mxu0
  %v360 = vadd.f32 0.0, %v359
  %361 = vmatmul.bf16.gmra.mxu0 %v329
  %v362 = vpop.f32.mrf.mxu0
  %v363 = vadd.f32 0.0, %v362
  %v364 = vpop.f32.mrf.mxu0
  %v365 = vadd.f32 0.0, %v364
  %366 = vmatmul.bf16.gmra.mxu0 %v330
  %v367 = vpop.f32.mrf.mxu0
  %v368 = vadd.f32 0.0, %v367
  %v369 = vpop.f32.mrf.mxu0
  %v370 = vadd.f32 0.0, %v369
  %371 = vmatmul.bf16.gmra.mxu0 %v331
  %v372 = vpop.f32.mrf.mxu0
  %v373 = vadd.f32 0.0, %v372
  %v374 = vpop.f32.mrf.mxu0
  %v375 = vadd.f32 0.0, %v374
  %376 = vmatmul.bf16.gmra.mxu0 %v332
  %v377 = vpop.f32.mrf.mxu0
  %v378 = vadd.f32 0.0, %v377
  %v379 = vpop.f32.mrf.mxu0
  %v380 = vadd.f32 0.0, %v379
  %381 = vmatmul.bf16.gmra.mxu0 %v333
  %v382 = vpop.f32.mrf.mxu0
  %v383 = vadd.f32 0.0, %v382
  %v384 = vpop.f32.mrf.mxu0
  %v385 = vadd.f32 0.0, %v384
  %386 = vmatmul.bf16.gmra.mxu0 %v334
  %v387 = vpop.f32.mrf.mxu0
  %v388 = vadd.f32 0.0, %v387
  %v389 = vpop.f32.mrf.mxu0
  %v390 = vadd.f32 0.0, %v389
  %391 = vdwg.mxu0
  %v392 = vpack.c.bf16 %v355, %v353
  %v393 = vpack.c.bf16 %v360, %v358
  %v394 = vpack.c.bf16 %v365, %v363
  %v395 = vpack.c.bf16 %v370, %v368
  %v396 = vpack.c.bf16 %v375, %v373
  %v397 = vpack.c.bf16 %v380, %v378
  %v398 = vpack.c.bf16 %v385, %v383
  %v399 = vpack.c.bf16 %v390, %v388
  %v401 = vperm.slane %v179, 0
  %v419 = vunpack.c.l.b16 %v50
  %v420 = vunpack.c.l.b16 %v51
  %v421 = vunpack.c.l.b16 %v52
  %v422 = vunpack.c.l.b16 %v53
  %v423 = vunpack.c.l.b16 %v54
  %v424 = vunpack.c.l.b16 %v55
  %v425 = vunpack.c.l.b16 %v56
  %v426 = vunpack.c.l.b16 %v57
  %v427 = vunpack.c.l.b16 %v58
  %v428 = vunpack.c.l.b16 %v59
  %v429 = vunpack.c.l.b16 %v60
  %v430 = vunpack.c.l.b16 %v61
  %v431 = vunpack.c.l.b16 %v62
  %v432 = vunpack.c.l.b16 %v63
  %v433 = vunpack.c.l.b16 %v64
  %v434 = vunpack.c.l.b16 %v65
  %v435 = vpack.c.b16 %v420, %v419
  %v436 = vpack.c.b16 %v422, %v421
  %v437 = vpack.c.b16 %v424, %v423
  %v438 = vpack.c.b16 %v426, %v425
  %v439 = vpack.c.b16 %v428, %v427
  %v440 = vpack.c.b16 %v430, %v429
  %v441 = vpack.c.b16 %v432, %v431
  %v442 = vpack.c.b16 %v434, %v433
  %451 = vmatpush.bf16.msra.mxu0 %v399
  %452 = vmatpush.bf16.msra.mxu0 %v398
  %453 = vmatpush.bf16.msra.mxu0 %v397
  %454 = vmatpush.bf16.msra.mxu0 %v396
  %455 = vmatpush.bf16.msra.mxu0 %v395
  %456 = vmatpush.bf16.msra.mxu0 %v394
  %457 = vmatpush.bf16.msra.mxu0 %v393
  %458 = vmatpush.bf16.msra.mxu0 %v392
  %459 = vmatmul.bf16.gmra.mxu0 %v435
  %v460 = vpop.f32.mrf.mxu0
  %v461 = vadd.f32 %v401, %v460
  %v462 = vpop.f32.mrf.mxu0
  %v463 = vadd.f32 %v401, %v462
  %464 = vmatmul.bf16.gmra.mxu0 %v436
  %v465 = vpop.f32.mrf.mxu0
  %v466 = vadd.f32 %v401, %v465
  %v467 = vpop.f32.mrf.mxu0
  %v468 = vadd.f32 %v401, %v467
  %469 = vmatmul.bf16.gmra.mxu0 %v437
  %v470 = vpop.f32.mrf.mxu0
  %v471 = vadd.f32 %v401, %v470
  %v472 = vpop.f32.mrf.mxu0
  %v473 = vadd.f32 %v401, %v472
  %474 = vmatmul.bf16.gmra.mxu0 %v438
  %v475 = vpop.f32.mrf.mxu0
  %v476 = vadd.f32 %v401, %v475
  %v477 = vpop.f32.mrf.mxu0
  %v478 = vadd.f32 %v401, %v477
  %479 = vmatmul.bf16.gmra.mxu0 %v439
  %v480 = vpop.f32.mrf.mxu0
  %v481 = vadd.f32 %v401, %v480
  %v482 = vpop.f32.mrf.mxu0
  %v483 = vadd.f32 %v401, %v482
  %484 = vmatmul.bf16.gmra.mxu0 %v440
  %v485 = vpop.f32.mrf.mxu0
  %v486 = vadd.f32 %v401, %v485
  %v487 = vpop.f32.mrf.mxu0
  %v488 = vadd.f32 %v401, %v487
  %489 = vmatmul.bf16.gmra.mxu0 %v441
  %v490 = vpop.f32.mrf.mxu0
  %v491 = vadd.f32 %v401, %v490
  %v492 = vpop.f32.mrf.mxu0
  %v493 = vadd.f32 %v401, %v492
  %494 = vmatmul.bf16.gmra.mxu0 %v442
  %v495 = vpop.f32.mrf.mxu0
  %v496 = vadd.f32 %v401, %v495
  %v497 = vpop.f32.mrf.mxu0
  %v498 = vadd.f32 %v401, %v497
  %499 = vdwg.mxu0
  %v500 = vmax.f32 %v461, 0.0
  %v501 = vmax.f32 %v463, 0.0
  %v502 = vmax.f32 %v466, 0.0
  %v503 = vmax.f32 %v468, 0.0
  %v504 = vmax.f32 %v471, 0.0
  %v505 = vmax.f32 %v473, 0.0
  %v506 = vmax.f32 %v476, 0.0
  %v507 = vmax.f32 %v478, 0.0
  %v508 = vmax.f32 %v481, 0.0
  %v509 = vmax.f32 %v483, 0.0
  %v510 = vmax.f32 %v486, 0.0
  %v511 = vmax.f32 %v488, 0.0
  %v512 = vmax.f32 %v491, 0.0
  %v513 = vmax.f32 %v493, 0.0
  %v514 = vmax.f32 %v496, 0.0
  %v515 = vmax.f32 %v498, 0.0
  %v516 = vmul.f32 %v500, %v131
  %v517 = vmul.f32 %v501, %v132
  %v518 = vmul.f32 %v502, %v133
  %v519 = vmul.f32 %v503, %v134
  %v520 = vmul.f32 %v504, %v135
  %v521 = vmul.f32 %v505, %v136
  %v522 = vmul.f32 %v506, %v137
  %v523 = vmul.f32 %v507, %v138
  %v524 = vmul.f32 %v508, %v139
  %v525 = vmul.f32 %v509, %v140
  %v526 = vmul.f32 %v510, %v141
  %v527 = vmul.f32 %v511, %v142
  %v528 = vmul.f32 %v512, %v143
  %v529 = vmul.f32 %v513, %v144
  %v530 = vmul.f32 %v514, %v145
  %v531 = vmul.f32 %v515, %v146
  %v532 = vadd.f32 %v516, %v517
  %v533 = vadd.f32 %v532, %v518
  %v534 = vadd.f32 %v533, %v519
  %v535 = vadd.f32 %v534, %v520
  %v536 = vadd.f32 %v535, %v521
  %v537 = vadd.f32 %v536, %v522
  %v538 = vadd.f32 %v537, %v523
  %v539 = vadd.f32 %v538, %v524
  %v540 = vadd.f32 %v539, %v525
  %v541 = vadd.f32 %v540, %v526
  %v542 = vadd.f32 %v541, %v527
  %v543 = vadd.f32 %v542, %v528
  %v544 = vadd.f32 %v543, %v529
  %v545 = vadd.f32 %v544, %v530
  %v546 = vadd.f32 %v545, %v531
  %v547 = vrot.slane %v546, 4
  %v548 = vadd.f32 %v546, %v547
  %v549 = vrot.slane %v548, 2
  %v550 = vadd.f32 %v548, %v549
  %v551 = vrot.slane %v550, 1
  %v552 = vadd.f32 %v550, %v551
  %v553 = vmul.f32 %v552, 0.0625
  %v554 = vmul.f32 %v516, %v516
  %v555 = vmul.f32 %v517, %v517
  %v556 = vmul.f32 %v518, %v518
  %v557 = vmul.f32 %v519, %v519
  %v558 = vmul.f32 %v520, %v520
  %v559 = vmul.f32 %v521, %v521
  %v560 = vmul.f32 %v522, %v522
  %v561 = vmul.f32 %v523, %v523
  %v562 = vmul.f32 %v524, %v524
  %v563 = vmul.f32 %v525, %v525
  %v564 = vmul.f32 %v526, %v526
  %v565 = vmul.f32 %v527, %v527
  %v566 = vmul.f32 %v528, %v528
  %v567 = vmul.f32 %v529, %v529
  %v568 = vmul.f32 %v530, %v530
  %v569 = vmul.f32 %v531, %v531
  %v570 = vadd.f32 %v554, %v555
  %v571 = vadd.f32 %v570, %v556
  %v572 = vadd.f32 %v571, %v557
  %v573 = vadd.f32 %v572, %v558
  %v574 = vadd.f32 %v573, %v559
  %v575 = vadd.f32 %v574, %v560
  %v576 = vadd.f32 %v575, %v561
  %v577 = vadd.f32 %v576, %v562
  %v578 = vadd.f32 %v577, %v563
  %v579 = vadd.f32 %v578, %v564
  %v580 = vadd.f32 %v579, %v565
  %v581 = vadd.f32 %v580, %v566
  %v582 = vadd.f32 %v581, %v567
  %v583 = vadd.f32 %v582, %v568
  %v584 = vadd.f32 %v583, %v569
  %v585 = vrot.slane %v584, 4
  %v586 = vadd.f32 %v584, %v585
  %v587 = vrot.slane %v586, 2
  %v588 = vadd.f32 %v586, %v587
  %v589 = vrot.slane %v588, 1
  %v590 = vadd.f32 %v588, %v589
  %v591 = vmul.f32 %v590, 0.0625
  %v592 = vmul.f32 %v553, %v553
  %v593 = vsub.f32 %v591, %v592
  %v594 = vadd.f32 %v593, 1e-05
  %v595 = vrsqrt.pop %v594
  %v596 = vmul.f32 %v595, %v594
  %v597 = vmul.f32 %v596, %v595
  %v598 = vmul.f32 0.5, %v597
  %v599 = vsub.f32 1.5, %v598
  %v600 = vmul.f32 %v595, %v599
  %vm601 = vweird.f32 %v594
  %vm602 = vweird.f32 %v595
  %vm603 = vmor %vm601, %vm602
  %v604 = vsel %vm603, %v595, %v600
  %v605 = vmul.f32 %v180, %v604
  %v606 = vmul.f32 %v553, %v605
  %v607 = vsub.f32 %v181, %v606
  %v609 = vperm.slane %v605, 0
  %v611 = vmul.f32 %v516, %v609
  %v612 = vmul.f32 %v517, %v609
  %v613 = vmul.f32 %v518, %v609
  %v614 = vmul.f32 %v519, %v609
  %v615 = vmul.f32 %v520, %v609
  %v616 = vmul.f32 %v521, %v609
  %v617 = vmul.f32 %v522, %v609
  %v618 = vmul.f32 %v523, %v609
  %v619 = vmul.f32 %v524, %v609
  %v620 = vmul.f32 %v525, %v609
  %v621 = vmul.f32 %v526, %v609
  %v622 = vmul.f32 %v527, %v609
  %v623 = vmul.f32 %v528, %v609
  %v624 = vmul.f32 %v529, %v609
  %v625 = vmul.f32 %v530, %v609
  %v626 = vmul.f32 %v531, %v609
  %v628 = vperm.slane %v607, 0
  %v630 = vadd.f32 %v611, %v628
  %v631 = vadd.f32 %v612, %v628
  %v632 = vadd.f32 %v613, %v628
  %v633 = vadd.f32 %v614, %v628
  %v634 = vadd.f32 %v615, %v628
  %v635 = vadd.f32 %v616, %v628
  %v636 = vadd.f32 %v617, %v628
  %v637 = vadd.f32 %v618, %v628
  %v638 = vadd.f32 %v619, %v628
  %v639 = vadd.f32 %v620, %v628
  %v640 = vadd.f32 %v621, %v628
  %v641 = vadd.f32 %v622, %v628
  %v642 = vadd.f32 %v623, %v628
  %v643 = vadd.f32 %v624, %v628
  %v644 = vadd.f32 %v625, %v628
  %v645 = vadd.f32 %v626, %v628
  %v646 = vld [vmem:[%s7] sm:$0xf]
  %v647 = vld [vmem:[%s7 + $0x4] sm:$0xf]
  %v648 = vld [vmem:[%s7 + $0x8] sm:$0xf]
  %v649 = vld [vmem:[%s7 + $0xc] sm:$0xf]
  %v650 = vld [vmem:[%s7 + $0x10] sm:$0xf]
  %v651 = vld [vmem:[%s7 + $0x14] sm:$0xf]
  %v652 = vld [vmem:[%s7 + $0x18] sm:$0xf]
  %v653 = vld [vmem:[%s7 + $0x1c] sm:$0xf]
  %v654 = vld [vmem:[%s7 + $0x20] sm:$0xf]
  %v655 = vld [vmem:[%s7 + $0x24] sm:$0xf]
  %v656 = vld [vmem:[%s7 + $0x28] sm:$0xf]
  %v657 = vld [vmem:[%s7 + $0x2c] sm:$0xf]
  %v658 = vld [vmem:[%s7 + $0x30] sm:$0xf]
  %v659 = vld [vmem:[%s7 + $0x34] sm:$0xf]
  %v660 = vld [vmem:[%s7 + $0x38] sm:$0xf]
  %v661 = vld [vmem:[%s7 + $0x3c] sm:$0xf]
  %v662 = vld [vmem:[%s8] sm:$0x1]
  %v663 = vld [vmem:[%s9] sm:$0x1]
  %v664 = vld [vmem:[%s10] sm:$0x1]
  %v665 = vpack.c.bf16 %v631, %v630
  %v666 = vpack.c.bf16 %v633, %v632
  %v667 = vpack.c.bf16 %v635, %v634
  %v668 = vpack.c.bf16 %v637, %v636
  %v669 = vpack.c.bf16 %v639, %v638
  %v670 = vpack.c.bf16 %v641, %v640
  %v671 = vpack.c.bf16 %v643, %v642
  %v672 = vpack.c.bf16 %v645, %v644
  %v689 = vunpack.c.l.b16 %v646
  %v690 = vunpack.c.l.b16 %v647
  %v691 = vunpack.c.l.b16 %v648
  %v692 = vunpack.c.l.b16 %v649
  %v693 = vunpack.c.l.b16 %v650
  %v694 = vunpack.c.l.b16 %v651
  %v695 = vunpack.c.l.b16 %v652
  %v696 = vunpack.c.l.b16 %v653
  %v697 = vunpack.c.l.b16 %v654
  %v698 = vunpack.c.l.b16 %v655
  %v699 = vunpack.c.l.b16 %v656
  %v700 = vunpack.c.l.b16 %v657
  %v701 = vunpack.c.l.b16 %v658
  %v702 = vunpack.c.l.b16 %v659
  %v703 = vunpack.c.l.b16 %v660
  %v704 = vunpack.c.l.b16 %v661
  %v705 = vpack.c.b16 %v690, %v689
  %v706 = vpack.c.b16 %v692, %v691
  %v707 = vpack.c.b16 %v694, %v693
  %v708 = vpack.c.b16 %v696, %v695
  %v709 = vpack.c.b16 %v698, %v697
  %v710 = vpack.c.b16 %v700, %v699
  %v711 = vpack.c.b16 %v702, %v701
  %v712 = vpack.c.b16 %v704, %v703
  %721 = vmatpush.bf16.msra.mxu0 %v712
  %722 = vmatpush.bf16.msra.mxu0 %v711
  %723 = vmatpush.bf16.msra.mxu0 %v710
  %724 = vmatpush.bf16.msra.mxu0 %v709
  %725 = vmatpush.bf16.msra.mxu0 %v708
  %726 = vmatpush.bf16.msra.mxu0 %v707
  %727 = vmatpush.bf16.msra.mxu0 %v706
  %728 = vmatpush.bf16.msra.mxu0 %v705
  %729 = vmatmul.bf16.gmra.mxu0 %v665
  %v730 = vpop.f32.mrf.mxu0
  %v731 = vadd.f32 0.0, %v730
  %v732 = vpop.f32.mrf.mxu0
  %v733 = vadd.f32 0.0, %v732
  %734 = vmatmul.bf16.gmra.mxu0 %v666
  %v735 = vpop.f32.mrf.mxu0
  %v736 = vadd.f32 0.0, %v735
  %v737 = vpop.f32.mrf.mxu0
  %v738 = vadd.f32 0.0, %v737
  %739 = vmatmul.bf16.gmra.mxu0 %v667
  %v740 = vpop.f32.mrf.mxu0
  %v741 = vadd.f32 0.0, %v740
  %v742 = vpop.f32.mrf.mxu0
  %v743 = vadd.f32 0.0, %v742
  %744 = vmatmul.bf16.gmra.mxu0 %v668
  %v745 = vpop.f32.mrf.mxu0
  %v746 = vadd.f32 0.0, %v745
  %v747 = vpop.f32.mrf.mxu0
  %v748 = vadd.f32 0.0, %v747
  %749 = vmatmul.bf16.gmra.mxu0 %v669
  %v750 = vpop.f32.mrf.mxu0
  %v751 = vadd.f32 0.0, %v750
  %v752 = vpop.f32.mrf.mxu0
  %v753 = vadd.f32 0.0, %v752
  %754 = vmatmul.bf16.gmra.mxu0 %v670
  %v755 = vpop.f32.mrf.mxu0
  %v756 = vadd.f32 0.0, %v755
  %v757 = vpop.f32.mrf.mxu0
  %v758 = vadd.f32 0.0, %v757
  %759 = vmatmul.bf16.gmra.mxu0 %v671
  %v760 = vpop.f32.mrf.mxu0
  %v761 = vadd.f32 0.0, %v760
  %v762 = vpop.f32.mrf.mxu0
  %v763 = vadd.f32 0.0, %v762
  %764 = vmatmul.bf16.gmra.mxu0 %v672
  %v765 = vpop.f32.mrf.mxu0
  %v766 = vadd.f32 0.0, %v765
  %v767 = vpop.f32.mrf.mxu0
  %v768 = vadd.f32 0.0, %v767
  %769 = vdwg.mxu0
  %v770 = vpack.c.bf16 %v733, %v731
  %v771 = vpack.c.bf16 %v738, %v736
  %v772 = vpack.c.bf16 %v743, %v741
  %v773 = vpack.c.bf16 %v748, %v746
  %v774 = vpack.c.bf16 %v753, %v751
  %v775 = vpack.c.bf16 %v758, %v756
  %v776 = vpack.c.bf16 %v763, %v761
  %v777 = vpack.c.bf16 %v768, %v766
  %778 = vmatpush.bf16.msra.mxu0 %v777
  %779 = vmatpush.bf16.msra.mxu0 %v776
  %780 = vmatpush.bf16.msra.mxu0 %v775
  %781 = vmatpush.bf16.msra.mxu0 %v774
  %782 = vmatpush.bf16.msra.mxu0 %v773
  %783 = vmatpush.bf16.msra.mxu0 %v772
  %784 = vmatpush.bf16.msra.mxu0 %v771
  %785 = vmatpush.bf16.msra.mxu0 %v770
  %786 = vmatmul.bf16.gmra.mxu0 %v327
  %v787 = vpop.f32.mrf.mxu0
  %v788 = vadd.f32 0.0, %v787
  %v789 = vpop.f32.mrf.mxu0
  %v790 = vadd.f32 0.0, %v789
  %791 = vmatmul.bf16.gmra.mxu0 %v328
  %v792 = vpop.f32.mrf.mxu0
  %v793 = vadd.f32 0.0, %v792
  %v794 = vpop.f32.mrf.mxu0
  %v795 = vadd.f32 0.0, %v794
  %796 = vmatmul.bf16.gmra.mxu0 %v329
  %v797 = vpop.f32.mrf.mxu0
  %v798 = vadd.f32 0.0, %v797
  %v799 = vpop.f32.mrf.mxu0
  %v800 = vadd.f32 0.0, %v799
  %801 = vmatmul.bf16.gmra.mxu0 %v330
  %v802 = vpop.f32.mrf.mxu0
  %v803 = vadd.f32 0.0, %v802
  %v804 = vpop.f32.mrf.mxu0
  %v805 = vadd.f32 0.0, %v804
  %806 = vmatmul.bf16.gmra.mxu0 %v331
  %v807 = vpop.f32.mrf.mxu0
  %v808 = vadd.f32 0.0, %v807
  %v809 = vpop.f32.mrf.mxu0
  %v810 = vadd.f32 0.0, %v809
  %811 = vmatmul.bf16.gmra.mxu0 %v332
  %v812 = vpop.f32.mrf.mxu0
  %v813 = vadd.f32 0.0, %v812
  %v814 = vpop.f32.mrf.mxu0
  %v815 = vadd.f32 0.0, %v814
  %816 = vmatmul.bf16.gmra.mxu0 %v333
  %v817 = vpop.f32.mrf.mxu0
  %v818 = vadd.f32 0.0, %v817
  %v819 = vpop.f32.mrf.mxu0
  %v820 = vadd.f32 0.0, %v819
  %821 = vmatmul.bf16.gmra.mxu0 %v334
  %v822 = vpop.f32.mrf.mxu0
  %v823 = vadd.f32 0.0, %v822
  %v824 = vpop.f32.mrf.mxu0
  %v825 = vadd.f32 0.0, %v824
  %826 = vdwg.mxu0
  %v827 = vpack.c.bf16 %v790, %v788
  %v828 = vpack.c.bf16 %v795, %v793
  %v829 = vpack.c.bf16 %v800, %v798
  %v830 = vpack.c.bf16 %v805, %v803
  %v831 = vpack.c.bf16 %v810, %v808
  %v832 = vpack.c.bf16 %v815, %v813
  %v833 = vpack.c.bf16 %v820, %v818
  %v834 = vpack.c.bf16 %v825, %v823
  %v836 = vperm.slane %v662, 0
  %838 = vmatpush.bf16.msra.mxu0 %v834
  %839 = vmatpush.bf16.msra.mxu0 %v833
  %840 = vmatpush.bf16.msra.mxu0 %v832
  %841 = vmatpush.bf16.msra.mxu0 %v831
  %842 = vmatpush.bf16.msra.mxu0 %v830
  %843 = vmatpush.bf16.msra.mxu0 %v829
  %844 = vmatpush.bf16.msra.mxu0 %v828
  %845 = vmatpush.bf16.msra.mxu0 %v827
  %846 = vmatmul.bf16.gmra.mxu0 %v435
  %v847 = vpop.f32.mrf.mxu0
  %v848 = vadd.f32 %v836, %v847
  %v849 = vpop.f32.mrf.mxu0
  %v850 = vadd.f32 %v836, %v849
  %851 = vmatmul.bf16.gmra.mxu0 %v436
  %v852 = vpop.f32.mrf.mxu0
  %v853 = vadd.f32 %v836, %v852
  %v854 = vpop.f32.mrf.mxu0
  %v855 = vadd.f32 %v836, %v854
  %856 = vmatmul.bf16.gmra.mxu0 %v437
  %v857 = vpop.f32.mrf.mxu0
  %v858 = vadd.f32 %v836, %v857
  %v859 = vpop.f32.mrf.mxu0
  %v860 = vadd.f32 %v836, %v859
  %861 = vmatmul.bf16.gmra.mxu0 %v438
  %v862 = vpop.f32.mrf.mxu0
  %v863 = vadd.f32 %v836, %v862
  %v864 = vpop.f32.mrf.mxu0
  %v865 = vadd.f32 %v836, %v864
  %866 = vmatmul.bf16.gmra.mxu0 %v439
  %v867 = vpop.f32.mrf.mxu0
  %v868 = vadd.f32 %v836, %v867
  %v869 = vpop.f32.mrf.mxu0
  %v870 = vadd.f32 %v836, %v869
  %871 = vmatmul.bf16.gmra.mxu0 %v440
  %v872 = vpop.f32.mrf.mxu0
  %v873 = vadd.f32 %v836, %v872
  %v874 = vpop.f32.mrf.mxu0
  %v875 = vadd.f32 %v836, %v874
  %876 = vmatmul.bf16.gmra.mxu0 %v441
  %v877 = vpop.f32.mrf.mxu0
  %v878 = vadd.f32 %v836, %v877
  %v879 = vpop.f32.mrf.mxu0
  %v880 = vadd.f32 %v836, %v879
  %881 = vmatmul.bf16.gmra.mxu0 %v442
  %v882 = vpop.f32.mrf.mxu0
  %v883 = vadd.f32 %v836, %v882
  %v884 = vpop.f32.mrf.mxu0
  %v885 = vadd.f32 %v836, %v884
  %886 = vdwg.mxu0
  %v887 = vmax.f32 %v848, 0.0
  %v888 = vmax.f32 %v850, 0.0
  %v889 = vmax.f32 %v853, 0.0
  %v890 = vmax.f32 %v855, 0.0
  %v891 = vmax.f32 %v858, 0.0
  %v892 = vmax.f32 %v860, 0.0
  %v893 = vmax.f32 %v863, 0.0
  %v894 = vmax.f32 %v865, 0.0
  %v895 = vmax.f32 %v868, 0.0
  %v896 = vmax.f32 %v870, 0.0
  %v897 = vmax.f32 %v873, 0.0
  %v898 = vmax.f32 %v875, 0.0
  %v899 = vmax.f32 %v878, 0.0
  %v900 = vmax.f32 %v880, 0.0
  %v901 = vmax.f32 %v883, 0.0
  %v902 = vmax.f32 %v885, 0.0
  %v903 = vmul.f32 %v887, %v131
  %v904 = vmul.f32 %v888, %v132
  %v905 = vmul.f32 %v889, %v133
  %v906 = vmul.f32 %v890, %v134
  %v907 = vmul.f32 %v891, %v135
  %v908 = vmul.f32 %v892, %v136
  %v909 = vmul.f32 %v893, %v137
  %v910 = vmul.f32 %v894, %v138
  %v911 = vmul.f32 %v895, %v139
  %v912 = vmul.f32 %v896, %v140
  %v913 = vmul.f32 %v897, %v141
  %v914 = vmul.f32 %v898, %v142
  %v915 = vmul.f32 %v899, %v143
  %v916 = vmul.f32 %v900, %v144
  %v917 = vmul.f32 %v901, %v145
  %v918 = vmul.f32 %v902, %v146
  %v919 = vadd.f32 %v903, %v904
  %v920 = vadd.f32 %v919, %v905
  %v921 = vadd.f32 %v920, %v906
  %v922 = vadd.f32 %v921, %v907
  %v923 = vadd.f32 %v922, %v908
  %v924 = vadd.f32 %v923, %v909
  %v925 = vadd.f32 %v924, %v910
  %v926 = vadd.f32 %v925, %v911
  %v927 = vadd.f32 %v926, %v912
  %v928 = vadd.f32 %v927, %v913
  %v929 = vadd.f32 %v928, %v914
  %v930 = vadd.f32 %v929, %v915
  %v931 = vadd.f32 %v930, %v916
  %v932 = vadd.f32 %v931, %v917
  %v933 = vadd.f32 %v932, %v918
  %v934 = vrot.slane %v933, 4
  %v935 = vadd.f32 %v933, %v934
  %v936 = vrot.slane %v935, 2
  %v937 = vadd.f32 %v935, %v936
  %v938 = vrot.slane %v937, 1
  %v939 = vadd.f32 %v937, %v938
  %v940 = vmul.f32 %v939, 0.0625
  %v941 = vmul.f32 %v903, %v903
  %v942 = vmul.f32 %v904, %v904
  %v943 = vmul.f32 %v905, %v905
  %v944 = vmul.f32 %v906, %v906
  %v945 = vmul.f32 %v907, %v907
  %v946 = vmul.f32 %v908, %v908
  %v947 = vmul.f32 %v909, %v909
  %v948 = vmul.f32 %v910, %v910
  %v949 = vmul.f32 %v911, %v911
  %v950 = vmul.f32 %v912, %v912
  %v951 = vmul.f32 %v913, %v913
  %v952 = vmul.f32 %v914, %v914
  %v953 = vmul.f32 %v915, %v915
  %v954 = vmul.f32 %v916, %v916
  %v955 = vmul.f32 %v917, %v917
  %v956 = vmul.f32 %v918, %v918
  %v957 = vadd.f32 %v941, %v942
  %v958 = vadd.f32 %v957, %v943
  %v959 = vadd.f32 %v958, %v944
  %v960 = vadd.f32 %v959, %v945
  %v961 = vadd.f32 %v960, %v946
  %v962 = vadd.f32 %v961, %v947
  %v963 = vadd.f32 %v962, %v948
  %v964 = vadd.f32 %v963, %v949
  %v965 = vadd.f32 %v964, %v950
  %v966 = vadd.f32 %v965, %v951
  %v967 = vadd.f32 %v966, %v952
  %v968 = vadd.f32 %v967, %v953
  %v969 = vadd.f32 %v968, %v954
  %v970 = vadd.f32 %v969, %v955
  %v971 = vadd.f32 %v970, %v956
  %v972 = vrot.slane %v971, 4
  %v973 = vadd.f32 %v971, %v972
  %v974 = vrot.slane %v973, 2
  %v975 = vadd.f32 %v973, %v974
  %v976 = vrot.slane %v975, 1
  %v977 = vadd.f32 %v975, %v976
  %v978 = vmul.f32 %v977, 0.0625
  %v979 = vmul.f32 %v940, %v940
  %v980 = vsub.f32 %v978, %v979
  %v981 = vadd.f32 %v980, 1e-05
  %v982 = vrsqrt.pop %v981
  %v983 = vmul.f32 %v982, %v981
  %v984 = vmul.f32 %v983, %v982
  %v985 = vmul.f32 0.5, %v984
  %v986 = vsub.f32 1.5, %v985
  %v987 = vmul.f32 %v982, %v986
  %vm988 = vweird.f32 %v981
  %vm989 = vweird.f32 %v982
  %vm990 = vmor %vm988, %vm989
  %v991 = vsel %vm990, %v982, %v987
  %v992 = vmul.f32 %v663, %v991
  %v993 = vmul.f32 %v940, %v992
  %v994 = vsub.f32 %v664, %v993
  %v996 = vperm.slane %v992, 0
  %v998 = vmul.f32 %v903, %v996
  %v999 = vmul.f32 %v904, %v996
  %v1000 = vmul.f32 %v905, %v996
  %v1001 = vmul.f32 %v906, %v996
  %v1002 = vmul.f32 %v907, %v996
  %v1003 = vmul.f32 %v908, %v996
  %v1004 = vmul.f32 %v909, %v996
  %v1005 = vmul.f32 %v910, %v996
  %v1006 = vmul.f32 %v911, %v996
  %v1007 = vmul.f32 %v912, %v996
  %v1008 = vmul.f32 %v913, %v996
  %v1009 = vmul.f32 %v914, %v996
  %v1010 = vmul.f32 %v915, %v996
  %v1011 = vmul.f32 %v916, %v996
  %v1012 = vmul.f32 %v917, %v996
  %v1013 = vmul.f32 %v918, %v996
  %v1015 = vperm.slane %v994, 0
  %v1017 = vadd.f32 %v998, %v1015
  %v1018 = vadd.f32 %v999, %v1015
  %v1019 = vadd.f32 %v1000, %v1015
  %v1020 = vadd.f32 %v1001, %v1015
  %v1021 = vadd.f32 %v1002, %v1015
  %v1022 = vadd.f32 %v1003, %v1015
  %v1023 = vadd.f32 %v1004, %v1015
  %v1024 = vadd.f32 %v1005, %v1015
  %v1025 = vadd.f32 %v1006, %v1015
  %v1026 = vadd.f32 %v1007, %v1015
  %v1027 = vadd.f32 %v1008, %v1015
  %v1028 = vadd.f32 %v1009, %v1015
  %v1029 = vadd.f32 %v1010, %v1015
  %v1030 = vadd.f32 %v1011, %v1015
  %v1031 = vadd.f32 %v1012, %v1015
  %v1032 = vadd.f32 %v1013, %v1015
  %v1033 = vld [vmem:[%s11] sm:$0xf]
  %v1034 = vld [vmem:[%s11 + $0x4] sm:$0xf]
  %v1035 = vld [vmem:[%s11 + $0x8] sm:$0xf]
  %v1036 = vld [vmem:[%s11 + $0xc] sm:$0xf]
  %v1037 = vld [vmem:[%s11 + $0x10] sm:$0xf]
  %v1038 = vld [vmem:[%s11 + $0x14] sm:$0xf]
  %v1039 = vld [vmem:[%s11 + $0x18] sm:$0xf]
  %v1040 = vld [vmem:[%s11 + $0x1c] sm:$0xf]
  %v1041 = vld [vmem:[%s11 + $0x20] sm:$0xf]
  %v1042 = vld [vmem:[%s11 + $0x24] sm:$0xf]
  %v1043 = vld [vmem:[%s11 + $0x28] sm:$0xf]
  %v1044 = vld [vmem:[%s11 + $0x2c] sm:$0xf]
  %v1045 = vld [vmem:[%s11 + $0x30] sm:$0xf]
  %v1046 = vld [vmem:[%s11 + $0x34] sm:$0xf]
  %v1047 = vld [vmem:[%s11 + $0x38] sm:$0xf]
  %v1048 = vld [vmem:[%s11 + $0x3c] sm:$0xf]
  %v1049 = vld [vmem:[%s12] sm:$0x1]
  %v1050 = vld [vmem:[%s13] sm:$0x1]
  %v1051 = vld [vmem:[%s14] sm:$0x1]
  %v1052 = vpack.c.bf16 %v1018, %v1017
  %v1053 = vpack.c.bf16 %v1020, %v1019
  %v1054 = vpack.c.bf16 %v1022, %v1021
  %v1055 = vpack.c.bf16 %v1024, %v1023
  %v1056 = vpack.c.bf16 %v1026, %v1025
  %v1057 = vpack.c.bf16 %v1028, %v1027
  %v1058 = vpack.c.bf16 %v1030, %v1029
  %v1059 = vpack.c.bf16 %v1032, %v1031
  %v1076 = vunpack.c.l.b16 %v1033
  %v1077 = vunpack.c.l.b16 %v1034
  %v1078 = vunpack.c.l.b16 %v1035
  %v1079 = vunpack.c.l.b16 %v1036
  %v1080 = vunpack.c.l.b16 %v1037
  %v1081 = vunpack.c.l.b16 %v1038
  %v1082 = vunpack.c.l.b16 %v1039
  %v1083 = vunpack.c.l.b16 %v1040
  %v1084 = vunpack.c.l.b16 %v1041
  %v1085 = vunpack.c.l.b16 %v1042
  %v1086 = vunpack.c.l.b16 %v1043
  %v1087 = vunpack.c.l.b16 %v1044
  %v1088 = vunpack.c.l.b16 %v1045
  %v1089 = vunpack.c.l.b16 %v1046
  %v1090 = vunpack.c.l.b16 %v1047
  %v1091 = vunpack.c.l.b16 %v1048
  %v1092 = vpack.c.b16 %v1077, %v1076
  %v1093 = vpack.c.b16 %v1079, %v1078
  %v1094 = vpack.c.b16 %v1081, %v1080
  %v1095 = vpack.c.b16 %v1083, %v1082
  %v1096 = vpack.c.b16 %v1085, %v1084
  %v1097 = vpack.c.b16 %v1087, %v1086
  %v1098 = vpack.c.b16 %v1089, %v1088
  %v1099 = vpack.c.b16 %v1091, %v1090
  %1108 = vmatpush.bf16.msra.mxu0 %v1099
  %1109 = vmatpush.bf16.msra.mxu0 %v1098
  %1110 = vmatpush.bf16.msra.mxu0 %v1097
  %1111 = vmatpush.bf16.msra.mxu0 %v1096
  %1112 = vmatpush.bf16.msra.mxu0 %v1095
  %1113 = vmatpush.bf16.msra.mxu0 %v1094
  %1114 = vmatpush.bf16.msra.mxu0 %v1093
  %1115 = vmatpush.bf16.msra.mxu0 %v1092
  %1116 = vmatmul.bf16.gmra.mxu0 %v1052
  %v1117 = vpop.f32.mrf.mxu0
  %v1118 = vadd.f32 0.0, %v1117
  %v1119 = vpop.f32.mrf.mxu0
  %v1120 = vadd.f32 0.0, %v1119
  %1121 = vmatmul.bf16.gmra.mxu0 %v1053
  %v1122 = vpop.f32.mrf.mxu0
  %v1123 = vadd.f32 0.0, %v1122
  %v1124 = vpop.f32.mrf.mxu0
  %v1125 = vadd.f32 0.0, %v1124
  %1126 = vmatmul.bf16.gmra.mxu0 %v1054
  %v1127 = vpop.f32.mrf.mxu0
  %v1128 = vadd.f32 0.0, %v1127
  %v1129 = vpop.f32.mrf.mxu0
  %v1130 = vadd.f32 0.0, %v1129
  %1131 = vmatmul.bf16.gmra.mxu0 %v1055
  %v1132 = vpop.f32.mrf.mxu0
  %v1133 = vadd.f32 0.0, %v1132
  %v1134 = vpop.f32.mrf.mxu0
  %v1135 = vadd.f32 0.0, %v1134
  %1136 = vmatmul.bf16.gmra.mxu0 %v1056
  %v1137 = vpop.f32.mrf.mxu0
  %v1138 = vadd.f32 0.0, %v1137
  %v1139 = vpop.f32.mrf.mxu0
  %v1140 = vadd.f32 0.0, %v1139
  %1141 = vmatmul.bf16.gmra.mxu0 %v1057
  %v1142 = vpop.f32.mrf.mxu0
  %v1143 = vadd.f32 0.0, %v1142
  %v1144 = vpop.f32.mrf.mxu0
  %v1145 = vadd.f32 0.0, %v1144
  %1146 = vmatmul.bf16.gmra.mxu0 %v1058
  %v1147 = vpop.f32.mrf.mxu0
  %v1148 = vadd.f32 0.0, %v1147
  %v1149 = vpop.f32.mrf.mxu0
  %v1150 = vadd.f32 0.0, %v1149
  %1151 = vmatmul.bf16.gmra.mxu0 %v1059
  %v1152 = vpop.f32.mrf.mxu0
  %v1153 = vadd.f32 0.0, %v1152
  %v1154 = vpop.f32.mrf.mxu0
  %v1155 = vadd.f32 0.0, %v1154
  %1156 = vdwg.mxu0
  %v1157 = vpack.c.bf16 %v1120, %v1118
  %v1158 = vpack.c.bf16 %v1125, %v1123
  %v1159 = vpack.c.bf16 %v1130, %v1128
  %v1160 = vpack.c.bf16 %v1135, %v1133
  %v1161 = vpack.c.bf16 %v1140, %v1138
  %v1162 = vpack.c.bf16 %v1145, %v1143
  %v1163 = vpack.c.bf16 %v1150, %v1148
  %v1164 = vpack.c.bf16 %v1155, %v1153
  %1165 = vmatpush.bf16.msra.mxu0 %v1164
  %1166 = vmatpush.bf16.msra.mxu0 %v1163
  %1167 = vmatpush.bf16.msra.mxu0 %v1162
  %1168 = vmatpush.bf16.msra.mxu0 %v1161
  %1169 = vmatpush.bf16.msra.mxu0 %v1160
  %1170 = vmatpush.bf16.msra.mxu0 %v1159
  %1171 = vmatpush.bf16.msra.mxu0 %v1158
  %1172 = vmatpush.bf16.msra.mxu0 %v1157
  %1173 = vmatmul.bf16.gmra.mxu0 %v327
  %v1174 = vpop.f32.mrf.mxu0
  %v1175 = vadd.f32 0.0, %v1174
  %v1176 = vpop.f32.mrf.mxu0
  %v1177 = vadd.f32 0.0, %v1176
  %1178 = vmatmul.bf16.gmra.mxu0 %v328
  %v1179 = vpop.f32.mrf.mxu0
  %v1180 = vadd.f32 0.0, %v1179
  %v1181 = vpop.f32.mrf.mxu0
  %v1182 = vadd.f32 0.0, %v1181
  %1183 = vmatmul.bf16.gmra.mxu0 %v329
  %v1184 = vpop.f32.mrf.mxu0
  %v1185 = vadd.f32 0.0, %v1184
  %v1186 = vpop.f32.mrf.mxu0
  %v1187 = vadd.f32 0.0, %v1186
  %1188 = vmatmul.bf16.gmra.mxu0 %v330
  %v1189 = vpop.f32.mrf.mxu0
  %v1190 = vadd.f32 0.0, %v1189
  %v1191 = vpop.f32.mrf.mxu0
  %v1192 = vadd.f32 0.0, %v1191
  %1193 = vmatmul.bf16.gmra.mxu0 %v331
  %v1194 = vpop.f32.mrf.mxu0
  %v1195 = vadd.f32 0.0, %v1194
  %v1196 = vpop.f32.mrf.mxu0
  %v1197 = vadd.f32 0.0, %v1196
  %1198 = vmatmul.bf16.gmra.mxu0 %v332
  %v1199 = vpop.f32.mrf.mxu0
  %v1200 = vadd.f32 0.0, %v1199
  %v1201 = vpop.f32.mrf.mxu0
  %v1202 = vadd.f32 0.0, %v1201
  %1203 = vmatmul.bf16.gmra.mxu0 %v333
  %v1204 = vpop.f32.mrf.mxu0
  %v1205 = vadd.f32 0.0, %v1204
  %v1206 = vpop.f32.mrf.mxu0
  %v1207 = vadd.f32 0.0, %v1206
  %1208 = vmatmul.bf16.gmra.mxu0 %v334
  %v1209 = vpop.f32.mrf.mxu0
  %v1210 = vadd.f32 0.0, %v1209
  %v1211 = vpop.f32.mrf.mxu0
  %v1212 = vadd.f32 0.0, %v1211
  %1213 = vdwg.mxu0
  %v1214 = vpack.c.bf16 %v1177, %v1175
  %v1215 = vpack.c.bf16 %v1182, %v1180
  %v1216 = vpack.c.bf16 %v1187, %v1185
  %v1217 = vpack.c.bf16 %v1192, %v1190
  %v1218 = vpack.c.bf16 %v1197, %v1195
  %v1219 = vpack.c.bf16 %v1202, %v1200
  %v1220 = vpack.c.bf16 %v1207, %v1205
  %v1221 = vpack.c.bf16 %v1212, %v1210
  %v1223 = vperm.slane %v1049, 0
  %1225 = vmatpush.bf16.msra.mxu0 %v1221
  %1226 = vmatpush.bf16.msra.mxu0 %v1220
  %1227 = vmatpush.bf16.msra.mxu0 %v1219
  %1228 = vmatpush.bf16.msra.mxu0 %v1218
  %1229 = vmatpush.bf16.msra.mxu0 %v1217
  %1230 = vmatpush.bf16.msra.mxu0 %v1216
  %1231 = vmatpush.bf16.msra.mxu0 %v1215
  %1232 = vmatpush.bf16.msra.mxu0 %v1214
  %1233 = vmatmul.bf16.gmra.mxu0 %v435
  %v1234 = vpop.f32.mrf.mxu0
  %v1235 = vadd.f32 %v1223, %v1234
  %v1236 = vpop.f32.mrf.mxu0
  %v1237 = vadd.f32 %v1223, %v1236
  %1238 = vmatmul.bf16.gmra.mxu0 %v436
  %v1239 = vpop.f32.mrf.mxu0
  %v1240 = vadd.f32 %v1223, %v1239
  %v1241 = vpop.f32.mrf.mxu0
  %v1242 = vadd.f32 %v1223, %v1241
  %1243 = vmatmul.bf16.gmra.mxu0 %v437
  %v1244 = vpop.f32.mrf.mxu0
  %v1245 = vadd.f32 %v1223, %v1244
  %v1246 = vpop.f32.mrf.mxu0
  %v1247 = vadd.f32 %v1223, %v1246
  %1248 = vmatmul.bf16.gmra.mxu0 %v438
  %v1249 = vpop.f32.mrf.mxu0
  %v1250 = vadd.f32 %v1223, %v1249
  %v1251 = vpop.f32.mrf.mxu0
  %v1252 = vadd.f32 %v1223, %v1251
  %1253 = vmatmul.bf16.gmra.mxu0 %v439
  %v1254 = vpop.f32.mrf.mxu0
  %v1255 = vadd.f32 %v1223, %v1254
  %v1256 = vpop.f32.mrf.mxu0
  %v1257 = vadd.f32 %v1223, %v1256
  %1258 = vmatmul.bf16.gmra.mxu0 %v440
  %v1259 = vpop.f32.mrf.mxu0
  %v1260 = vadd.f32 %v1223, %v1259
  %v1261 = vpop.f32.mrf.mxu0
  %v1262 = vadd.f32 %v1223, %v1261
  %1263 = vmatmul.bf16.gmra.mxu0 %v441
  %v1264 = vpop.f32.mrf.mxu0
  %v1265 = vadd.f32 %v1223, %v1264
  %v1266 = vpop.f32.mrf.mxu0
  %v1267 = vadd.f32 %v1223, %v1266
  %1268 = vmatmul.bf16.gmra.mxu0 %v442
  %v1269 = vpop.f32.mrf.mxu0
  %v1270 = vadd.f32 %v1223, %v1269
  %v1271 = vpop.f32.mrf.mxu0
  %v1272 = vadd.f32 %v1223, %v1271
  %1273 = vdwg.mxu0
  %v1274 = vmax.f32 %v1235, 0.0
  %v1275 = vmax.f32 %v1237, 0.0
  %v1276 = vmax.f32 %v1240, 0.0
  %v1277 = vmax.f32 %v1242, 0.0
  %v1278 = vmax.f32 %v1245, 0.0
  %v1279 = vmax.f32 %v1247, 0.0
  %v1280 = vmax.f32 %v1250, 0.0
  %v1281 = vmax.f32 %v1252, 0.0
  %v1282 = vmax.f32 %v1255, 0.0
  %v1283 = vmax.f32 %v1257, 0.0
  %v1284 = vmax.f32 %v1260, 0.0
  %v1285 = vmax.f32 %v1262, 0.0
  %v1286 = vmax.f32 %v1265, 0.0
  %v1287 = vmax.f32 %v1267, 0.0
  %v1288 = vmax.f32 %v1270, 0.0
  %v1289 = vmax.f32 %v1272, 0.0
  %v1290 = vmul.f32 %v1274, %v131
  %v1291 = vmul.f32 %v1275, %v132
  %v1292 = vmul.f32 %v1276, %v133
  %v1293 = vmul.f32 %v1277, %v134
  %v1294 = vmul.f32 %v1278, %v135
  %v1295 = vmul.f32 %v1279, %v136
  %v1296 = vmul.f32 %v1280, %v137
  %v1297 = vmul.f32 %v1281, %v138
  %v1298 = vmul.f32 %v1282, %v139
  %v1299 = vmul.f32 %v1283, %v140
  %v1300 = vmul.f32 %v1284, %v141
  %v1301 = vmul.f32 %v1285, %v142
  %v1302 = vmul.f32 %v1286, %v143
  %v1303 = vmul.f32 %v1287, %v144
  %v1304 = vmul.f32 %v1288, %v145
  %v1305 = vmul.f32 %v1289, %v146
  %v1306 = vadd.f32 %v1290, %v1291
  %v1307 = vadd.f32 %v1306, %v1292
  %v1308 = vadd.f32 %v1307, %v1293
  %v1309 = vadd.f32 %v1308, %v1294
  %v1310 = vadd.f32 %v1309, %v1295
  %v1311 = vadd.f32 %v1310, %v1296
  %v1312 = vadd.f32 %v1311, %v1297
  %v1313 = vadd.f32 %v1312, %v1298
  %v1314 = vadd.f32 %v1313, %v1299
  %v1315 = vadd.f32 %v1314, %v1300
  %v1316 = vadd.f32 %v1315, %v1301
  %v1317 = vadd.f32 %v1316, %v1302
  %v1318 = vadd.f32 %v1317, %v1303
  %v1319 = vadd.f32 %v1318, %v1304
  %v1320 = vadd.f32 %v1319, %v1305
  %v1321 = vrot.slane %v1320, 4
  %v1322 = vadd.f32 %v1320, %v1321
  %v1323 = vrot.slane %v1322, 2
  %v1324 = vadd.f32 %v1322, %v1323
  %v1325 = vrot.slane %v1324, 1
  %v1326 = vadd.f32 %v1324, %v1325
  %v1327 = vmul.f32 %v1326, 0.0625
  %v1328 = vmul.f32 %v1290, %v1290
  %v1329 = vmul.f32 %v1291, %v1291
  %v1330 = vmul.f32 %v1292, %v1292
  %v1331 = vmul.f32 %v1293, %v1293
  %v1332 = vmul.f32 %v1294, %v1294
  %v1333 = vmul.f32 %v1295, %v1295
  %v1334 = vmul.f32 %v1296, %v1296
  %v1335 = vmul.f32 %v1297, %v1297
  %v1336 = vmul.f32 %v1298, %v1298
  %v1337 = vmul.f32 %v1299, %v1299
  %v1338 = vmul.f32 %v1300, %v1300
  %v1339 = vmul.f32 %v1301, %v1301
  %v1340 = vmul.f32 %v1302, %v1302
  %v1341 = vmul.f32 %v1303, %v1303
  %v1342 = vmul.f32 %v1304, %v1304
  %v1343 = vmul.f32 %v1305, %v1305
  %v1344 = vadd.f32 %v1328, %v1329
  %v1345 = vadd.f32 %v1344, %v1330
  %v1346 = vadd.f32 %v1345, %v1331
  %v1347 = vadd.f32 %v1346, %v1332
  %v1348 = vadd.f32 %v1347, %v1333
  %v1349 = vadd.f32 %v1348, %v1334
  %v1350 = vadd.f32 %v1349, %v1335
  %v1351 = vadd.f32 %v1350, %v1336
  %v1352 = vadd.f32 %v1351, %v1337
  %v1353 = vadd.f32 %v1352, %v1338
  %v1354 = vadd.f32 %v1353, %v1339
  %v1355 = vadd.f32 %v1354, %v1340
  %v1356 = vadd.f32 %v1355, %v1341
  %v1357 = vadd.f32 %v1356, %v1342
  %v1358 = vadd.f32 %v1357, %v1343
  %v1359 = vrot.slane %v1358, 4
  %v1360 = vadd.f32 %v1358, %v1359
  %v1361 = vrot.slane %v1360, 2
  %v1362 = vadd.f32 %v1360, %v1361
  %v1363 = vrot.slane %v1362, 1
  %v1364 = vadd.f32 %v1362, %v1363
  %v1365 = vmul.f32 %v1364, 0.0625
  %v1366 = vmul.f32 %v1327, %v1327
  %v1367 = vsub.f32 %v1365, %v1366
  %v1368 = vadd.f32 %v1367, 1e-05
  %v1369 = vrsqrt.pop %v1368
  %v1370 = vmul.f32 %v1369, %v1368
  %v1371 = vmul.f32 %v1370, %v1369
  %v1372 = vmul.f32 0.5, %v1371
  %v1373 = vsub.f32 1.5, %v1372
  %v1374 = vmul.f32 %v1369, %v1373
  %vm1375 = vweird.f32 %v1368
  %vm1376 = vweird.f32 %v1369
  %vm1377 = vmor %vm1375, %vm1376
  %v1378 = vsel %vm1377, %v1369, %v1374
  %v1379 = vmul.f32 %v1050, %v1378
  %v1380 = vmul.f32 %v1327, %v1379
  %v1381 = vsub.f32 %v1051, %v1380
  %v1383 = vperm.slane %v1379, 0
  %v1385 = vmul.f32 %v1290, %v1383
  %v1386 = vmul.f32 %v1291, %v1383
  %v1387 = vmul.f32 %v1292, %v1383
  %v1388 = vmul.f32 %v1293, %v1383
  %v1389 = vmul.f32 %v1294, %v1383
  %v1390 = vmul.f32 %v1295, %v1383
  %v1391 = vmul.f32 %v1296, %v1383
  %v1392 = vmul.f32 %v1297, %v1383
  %v1393 = vmul.f32 %v1298, %v1383
  %v1394 = vmul.f32 %v1299, %v1383
  %v1395 = vmul.f32 %v1300, %v1383
  %v1396 = vmul.f32 %v1301, %v1383
  %v1397 = vmul.f32 %v1302, %v1383
  %v1398 = vmul.f32 %v1303, %v1383
  %v1399 = vmul.f32 %v1304, %v1383
  %v1400 = vmul.f32 %v1305, %v1383
  %v1402 = vperm.slane %v1381, 0
  %v1404 = vadd.f32 %v1385, %v1402
  %v1405 = vadd.f32 %v1386, %v1402
  %v1406 = vadd.f32 %v1387, %v1402
  %v1407 = vadd.f32 %v1388, %v1402
  %v1408 = vadd.f32 %v1389, %v1402
  %v1409 = vadd.f32 %v1390, %v1402
  %v1410 = vadd.f32 %v1391, %v1402
  %v1411 = vadd.f32 %v1392, %v1402
  %v1412 = vadd.f32 %v1393, %v1402
  %v1413 = vadd.f32 %v1394, %v1402
  %v1414 = vadd.f32 %v1395, %v1402
  %v1415 = vadd.f32 %v1396, %v1402
  %v1416 = vadd.f32 %v1397, %v1402
  %v1417 = vadd.f32 %v1398, %v1402
  %v1418 = vadd.f32 %v1399, %v1402
  %v1419 = vadd.f32 %v1400, %v1402
  %1420 = vst [vmem:[%s15] sm:$0xff] %v1404
  %1421 = vst [vmem:[%s15 + $0x8] sm:$0xff] %v1405
  %1422 = vst [vmem:[%s15 + $0x10] sm:$0xff] %v1406
  %1423 = vst [vmem:[%s15 + $0x18] sm:$0xff] %v1407
  %1424 = vst [vmem:[%s15 + $0x20] sm:$0xff] %v1408
  %1425 = vst [vmem:[%s15 + $0x28] sm:$0xff] %v1409
  %1426 = vst [vmem:[%s15 + $0x30] sm:$0xff] %v1410
  %1427 = vst [vmem:[%s15 + $0x38] sm:$0xff] %v1411
  %1428 = vst [vmem:[%s15 + $0x40] sm:$0xff] %v1412
  %1429 = vst [vmem:[%s15 + $0x48] sm:$0xff] %v1413
  %1430 = vst [vmem:[%s15 + $0x50] sm:$0xff] %v1414
  %1431 = vst [vmem:[%s15 + $0x58] sm:$0xff] %v1415
  %1432 = vst [vmem:[%s15 + $0x60] sm:$0xff] %v1416
  %1433 = vst [vmem:[%s15 + $0x68] sm:$0xff] %v1417
  %1434 = vst [vmem:[%s15 + $0x70] sm:$0xff] %v1418
  %1435 = vst [vmem:[%s15 + $0x78] sm:$0xff] %v1419
  // Predicated region
  $region62: #{hgcn_encoder.1} parent=0 // pred_check
    _
  $region63: #{hgcn_encoder.1} parent=0 // pred_check_branch
    %1437 = sbr.rel (0) target = $region65
  $region64: #{hgcn_encoder.1} parent=0 // pred_region
    _
  $region65: #{hgcn_encoder.1} parent=0 // pred_fallthru
    _
  // Predicated region
  $region66: #{hgcn_encoder.1} parent=0 // pred_check
    _
  $region67: #{hgcn_encoder.1} parent=0 // pred_check_branch
    %1439 = sbr.rel (0) target = $region69
  $region68: #{hgcn_encoder.1} parent=0 // pred_region
    _
  $region69: #{hgcn_encoder.1} parent=0 // pred_fallthru
    _

</llo_original>
